<compile_context>
chip_gen: v5e
topology: v5e:2x2
jax: 0.10.0
libtpu: 0.0.40
codegen_flags: <defaults>
</compile_context>

<pallas_src>
import jax
import jax.numpy as jnp
from jax.experimental import pallas as pl
from jax.experimental.pallas import tpu as pltpu


def _round_up(x, m):
    return ((x + m - 1) // m) * m


def _edge_decoder_kernel(zs_ref, zd_ref, w1a_ref, w1b_ref, b1_ref, w2_ref,
                         b2_ref, o_ref):
    # zs/zd: [TE, H]   w1a/w1b: [H, H]   b1/w2: [1, H]
    # b2:    (1,) in SMEM                o:     [1, 1, TE]
    h = jnp.dot(zs_ref[...], w1a_ref[...], preferred_element_type=jnp.float32)
    h = h + jnp.dot(zd_ref[...], w1b_ref[...],
                    preferred_element_type=jnp.float32)
    h = jnp.maximum(h + b1_ref[...], 0.0)  # bias + ReLU in f32

    # Second layer ([TE,H] @ [H,1]) done on VPU + XLU instead of an N=1 MXU op.
    out = jnp.sum(h * w2_ref[...], axis=-1) + b2_ref[0]  # [TE], lane-dense
    o_ref[...] = out.reshape(o_ref.shape).astype(o_ref.dtype)


def edge_decoder_pallas(z_src, z_dst, edge_label_index, params, *,
                        tile_e=512, compute_dtype=None):
    """Pallas implementation of EdgeDecoder.forward.

    tile_e:        edge-tile size (rounded to a multiple of 128; 512-2048 is a
                   good range on all TPU generations).
    compute_dtype: optional narrow dtype (e.g. jnp.bfloat16) for the gathered
                   features and W1 to halve the dominant HBM read on v6e/v7x;
                   accumulation, bias and ReLU stay in float32.
    """
    w1, b1, w2, b2 = params  # torch layout: w1 [H,2H], b1 [H], w2 [1,H], b2 [1]
    H = w1.shape[0]
    out_dtype = z_src.dtype

    row, col = edge_label_index[0], edge_label_index[1]
    E = row.shape[0]

    # Tile: multiple of 128 (lane-dense output store), capped for small E.
    tile_e = max(128, _round_up(tile_e, 128))
    tile = min(tile_e, _round_up(E, 128))
    E_pad = _round_up(E, tile)
    num_tiles = E_pad // tile

    # Pad only the int32 index arrays (index 0 is always valid), then gather.
    if E_pad != E:
        row = jnp.pad(row, (0, E_pad - E))
        col = jnp.pad(col, (0, E_pad - E))
    zs = jnp.take(z_src, row, axis=0)  # [E_pad, H]
    zd = jnp.take(z_dst, col, axis=0)  # [E_pad, H]

    # Split W1 so no [E, 2H] concat is ever materialized:
    #   z @ W1.T == zs @ W1[:, :H].T + zd @ W1[:, H:].T
    w1a = w1[:, :H].T                            # [H, H]
    w1b = w1[:, H:].T                            # [H, H]
    b1_k = b1.reshape(1, H).astype(jnp.float32)  # [1, H]
    w2_k = w2.reshape(1, H).astype(jnp.float32)  # [1, H] row for VPU reduce
    b2_k = b2.reshape(1).astype(jnp.float32)     # (1,) SMEM scalar

    if compute_dtype is not None:
        zs = zs.astype(compute_dtype)
        zd = zd.astype(compute_dtype)
        w1a = w1a.astype(compute_dtype)
        w1b = w1b.astype(compute_dtype)

    itemsize = jnp.dtype(zs.dtype).itemsize
    cost = pl.CostEstimate(
        flops=2 * E_pad * (2 * H) * H + 3 * E_pad * H,
        transcendentals=0,
        bytes_accessed=(2 * E_pad * H + 2 * H * H) * itemsize
        + (2 * H + 1) * 4
        + E_pad * jnp.dtype(out_dtype).itemsize,
    )

    out = pl.pallas_call(
        _edge_decoder_kernel,
        out_shape=jax.ShapeDtypeStruct((num_tiles, 1, tile), out_dtype),
        grid_spec=pltpu.PrefetchScalarGridSpec(
            num_scalar_prefetch=0,
            grid=(num_tiles,),
            in_specs=[
                pl.BlockSpec((tile, H), lambda i: (i, 0)),   # zs tile
                pl.BlockSpec((tile, H), lambda i: (i, 0)),   # zd tile
                pl.BlockSpec((H, H), lambda i: (0, 0)),      # W1a (resident)
                pl.BlockSpec((H, H), lambda i: (0, 0)),      # W1b (resident)
                pl.BlockSpec((1, H), lambda i: (0, 0)),      # b1 row
                pl.BlockSpec((1, H), lambda i: (0, 0)),      # w2 row
                pl.BlockSpec(memory_space=pltpu.MemorySpace.SMEM),  # b2 scalar
            ],
            out_specs=pl.BlockSpec((1, 1, tile), lambda i: (i, 0, 0)),
        ),
        compiler_params=pltpu.CompilerParams(
            dimension_semantics=("parallel",),  # shards over 2 TCs on v7x
        ),
        cost_estimate=cost,
    )(zs, zd, w1a, w1b, b1_k, w2_k, b2_k)

    return out.reshape(-1)[:E]  # .view(-1), padded rows sliced off


def init_params(key, hidden_channels, dtype=jnp.float32):
    """Deterministic torch.nn.Linear-style init (uniform in +-1/sqrt(fan_in))."""
    k1, k2, k3, k4 = jax.random.split(key, 4)
    H = hidden_channels
    bound1 = 1.0 / jnp.sqrt(2.0 * H)
    bound2 = 1.0 / jnp.sqrt(1.0 * H)
    w1 = jax.random.uniform(k1, (H, 2 * H), dtype, -bound1, bound1)  # lin1.weight
    b1 = jax.random.uniform(k2, (H,), dtype, -bound1, bound1)        # lin1.bias
    w2 = jax.random.uniform(k3, (1, H), dtype, -bound2, bound2)      # lin2.weight
    b2 = jax.random.uniform(k4, (1,), dtype, -bound2, bound2)        # lin2.bias
    return w1, b1, w2, b2


def edge_decoder_ref(z_src, z_dst, edge_label_index, params):
    """Pure-JAX reference mirroring the PyTorch forward."""
    w1, b1, w2, b2 = params
    row, col = edge_label_index[0], edge_label_index[1]
    z = jnp.concatenate([z_src[row], z_dst[col]], axis=-1)
    z = jnp.maximum(z @ w1.T + b1, 0.0)
    z = z @ w2.T + b2
    return z.reshape(-1)


if __name__ == "__main__":
    key = jax.random.PRNGKey(0)
    k_src, k_dst, k_row, k_col, k_par = jax.random.split(key, 5)

    hidden = 32          # hidden_channels
    n_src, n_dst = 20, 24
    n_edges = 384

    z_src = jax.random.normal(k_src, (n_src, hidden), jnp.float32)
    z_dst = jax.random.normal(k_dst, (n_dst, hidden), jnp.float32)
    row = jax.random.randint(k_row, (n_edges,), 0, n_src)
    col = jax.random.randint(k_col, (n_edges,), 0, n_dst)
    edge_label_index = jnp.stack([row, col], axis=0)

    params = init_params(k_par, hidden)
    ref = edge_decoder_ref(z_src, z_dst, edge_label_index, params)

    # 1) default large tile (single tile covers all edges)
    out = edge_decoder_pallas(z_src, z_dst, edge_label_index, params)
    jax.block_until_ready(out)
    assert out.shape == (n_edges,)
    assert jnp.allclose(out, ref, atol=1e-5, rtol=1e-5)

    # 2) multi-tile grid (exercises the parallel edge-tile axis)
    out_mt = edge_decoder_pallas(z_src, z_dst, edge_label_index, params,
                                 tile_e=128)
    jax.block_until_ready(out_mt)
    assert jnp.allclose(out_mt, ref, atol=1e-5, rtol=1e-5)

    # 3) bf16 feature/weight path (v6e/v7x traffic optimization), f32 accumulate
    out_bf16 = edge_decoder_pallas(z_src, z_dst, edge_label_index, params,
                                   compute_dtype=jnp.bfloat16)
    jax.block_until_ready(out_bf16)
    assert jnp.allclose(out_bf16, ref, atol=5e-2, rtol=5e-2)

    print("KERNEL_OK")
</pallas_src>

<mosaic_0001>
module attributes {stable_mosaic.version = 11 : i64} {
  func.func @_edge_decoder_kernel(%arg0: i32, %arg1: memref<384x32xf32, #tpu.memory_space<vmem>>, %arg2: memref<384x32xf32, #tpu.memory_space<vmem>>, %arg3: memref<32x32xf32, #tpu.memory_space<vmem>>, %arg4: memref<32x32xf32, #tpu.memory_space<vmem>>, %arg5: memref<1x32xf32, #tpu.memory_space<vmem>>, %arg6: memref<1x32xf32, #tpu.memory_space<vmem>>, %arg7: memref<1xf32, #tpu.memory_space<smem>>, %arg8: memref<1x1x384xf32, #tpu.memory_space<vmem>>) attributes {dimension_semantics = [#tpu.dimension_semantics<parallel>], iteration_bounds = array<i64: 1>, scalar_prefetch = 0 : i64, scratch_operands = 0 : i64, tpu.core_type = #tpu.core_type<tc>, window_params = [{transform_indices = @transform_0, window_bounds = array<i64: 384, 32>}, {transform_indices = @transform_1, window_bounds = array<i64: 384, 32>}, {pipeline_mode = #tpu.pipeline_mode<synchronous>, transform_indices = @transform_2, window_bounds = array<i64: 32, 32>}, {pipeline_mode = #tpu.pipeline_mode<synchronous>, transform_indices = @transform_3, window_bounds = array<i64: 32, 32>}, {pipeline_mode = #tpu.pipeline_mode<synchronous>, transform_indices = @transform_4, window_bounds = array<i64: 1, 32>}, {pipeline_mode = #tpu.pipeline_mode<synchronous>, transform_indices = @transform_5, window_bounds = array<i64: 1, 32>}, {transform_indices = @transform_6, window_bounds = array<i64: 1>}, {transform_indices = @transform_7, window_bounds = array<i64: 1, 1, 384>}]} {
    %c0 = arith.constant 0 : index
    %c0_0 = arith.constant 0 : index
    %0 = vector.load %arg1[%c0, %c0_0] : memref<384x32xf32, #tpu.memory_space<vmem>>, vector<384x32xf32>
    %c0_1 = arith.constant 0 : index
    %c0_2 = arith.constant 0 : index
    %1 = vector.load %arg3[%c0_1, %c0_2] : memref<32x32xf32, #tpu.memory_space<vmem>>, vector<32x32xf32>
    %cst = arith.constant dense<0.000000e+00> : vector<384x32xf32>
    %2 = tpu.matmul %0, %1, %cst {dimension_numbers = #tpu.dot_dimension_numbers<[1], [0], [0], [1], [0, 0, 1, 1], [], []>} : vector<384x32xf32>, vector<32x32xf32>, vector<384x32xf32> -> vector<384x32xf32>
    %c0_3 = arith.constant 0 : index
    %c0_4 = arith.constant 0 : index
    %3 = vector.load %arg2[%c0_3, %c0_4] : memref<384x32xf32, #tpu.memory_space<vmem>>, vector<384x32xf32>
    %c0_5 = arith.constant 0 : index
    %c0_6 = arith.constant 0 : index
    %4 = vector.load %arg4[%c0_5, %c0_6] : memref<32x32xf32, #tpu.memory_space<vmem>>, vector<32x32xf32>
    %cst_7 = arith.constant dense<0.000000e+00> : vector<384x32xf32>
    %5 = tpu.matmul %3, %4, %cst_7 {dimension_numbers = #tpu.dot_dimension_numbers<[1], [0], [0], [1], [0, 0, 1, 1], [], []>} : vector<384x32xf32>, vector<32x32xf32>, vector<384x32xf32> -> vector<384x32xf32>
    %6 = arith.addf %2, %5 : vector<384x32xf32>
    %c0_8 = arith.constant 0 : index
    %c0_9 = arith.constant 0 : index
    %7 = vector.load %arg5[%c0_8, %c0_9] : memref<1x32xf32, #tpu.memory_space<vmem>>, vector<1x32xf32>
    %8 = vector.broadcast %7 : vector<1x32xf32> to vector<384x32xf32>
    %9 = arith.addf %6, %8 : vector<384x32xf32>
    %cst_10 = arith.constant 0.000000e+00 : f32
    %10 = vector.broadcast %cst_10 : f32 to vector<384x32xf32>
    %11 = arith.maximumf %9, %10 : vector<384x32xf32>
    %c0_11 = arith.constant 0 : index
    %c0_12 = arith.constant 0 : index
    %12 = vector.load %arg6[%c0_11, %c0_12] : memref<1x32xf32, #tpu.memory_space<vmem>>, vector<1x32xf32>
    %13 = vector.broadcast %12 : vector<1x32xf32> to vector<384x32xf32>
    %14 = arith.mulf %11, %13 : vector<384x32xf32>
    %cst_13 = arith.constant dense<0.000000e+00> : vector<384xf32>
    %15 = vector.multi_reduction <add>, %14, %cst_13 [1] : vector<384x32xf32> to vector<384xf32>
    %c0_14 = arith.constant 0 : index
    %16 = memref.load %arg7[%c0_14] : memref<1xf32, #tpu.memory_space<smem>>
    %17 = vector.broadcast %16 : f32 to vector<384xf32>
    %18 = arith.addf %15, %17 : vector<384xf32>
    %19 = vector.shape_cast %18 : vector<384xf32> to vector<1x1x384xf32>
    %c0_15 = arith.constant 0 : index
    %c0_16 = arith.constant 0 : index
    %c0_17 = arith.constant 0 : index
    %20 = vector.load %arg8[%c0_15, %c0_16, %c0_17] : memref<1x1x384xf32, #tpu.memory_space<vmem>>, vector<1x1x384xf32>
    tpu.vector_store %arg8[%c0_15, %c0_16, %c0_17], %19 {strides = array<i32>} : memref<1x1x384xf32, #tpu.memory_space<vmem>>, vector<1x1x384xf32>,
    return
  }
  func.func @transform_0(%arg0: i32) -> (i32, i32) {
    %c0_i32 = arith.constant 0 : i32
    %c0_i32_0 = arith.constant 0 : i32
    return %arg0, %c0_i32 : i32, i32
  }
  func.func @transform_1(%arg0: i32) -> (i32, i32) {
    %c0_i32 = arith.constant 0 : i32
    %c0_i32_0 = arith.constant 0 : i32
    return %arg0, %c0_i32 : i32, i32
  }
  func.func @transform_2(%arg0: i32) -> (i32, i32) {
    %c0_i32 = arith.constant 0 : i32
    %c0_i32_0 = arith.constant 0 : i32
    %c0_i32_1 = arith.constant 0 : i32
    return %c0_i32, %c0_i32_0 : i32, i32
  }
  func.func @transform_3(%arg0: i32) -> (i32, i32) {
    %c0_i32 = arith.constant 0 : i32
    %c0_i32_0 = arith.constant 0 : i32
    %c0_i32_1 = arith.constant 0 : i32
    return %c0_i32, %c0_i32_0 : i32, i32
  }
  func.func @transform_4(%arg0: i32) -> (i32, i32) {
    %c0_i32 = arith.constant 0 : i32
    %c0_i32_0 = arith.constant 0 : i32
    %c0_i32_1 = arith.constant 0 : i32
    return %c0_i32, %c0_i32_0 : i32, i32
  }
  func.func @transform_5(%arg0: i32) -> (i32, i32) {
    %c0_i32 = arith.constant 0 : i32
    %c0_i32_0 = arith.constant 0 : i32
    %c0_i32_1 = arith.constant 0 : i32
    return %c0_i32, %c0_i32_0 : i32, i32
  }
  func.func @transform_6(%arg0: i32) -> i32 {
    %c0_i32 = arith.constant 0 : i32
    %c0_i32_0 = arith.constant 0 : i32
    return %c0_i32 : i32
  }
  func.func @transform_7(%arg0: i32) -> (i32, i32, i32) {
    %c0_i32 = arith.constant 0 : i32
    %c0_i32_0 = arith.constant 0 : i32
    %c0_i32_1 = arith.constant 0 : i32
    return %arg0, %c0_i32, %c0_i32_0 : i32, i32, i32
  }
}

</mosaic_0001>

<llo_original>
// kernel: tpu_custom_call.1
$region0: #{tpu_custom_call.1}
  #allocation0 [shape = 'u32[]', space=smem, size = 0x4, offset = 0x4, fixed_abs, tag = 'smem constant byte address 0x4 - core index']
  #allocation1 [shape = 'u32[72,128]{1,0:T(1,128)}', space=vmem, size = 0x9000, scoped, tag = 'internal scratch']
  #allocation2 [shape = 'f32[1]{0:T(128)S(6)}', space=smem, size = 0x200, scoped, tag = 'scoped memory for tpu_custom_call.1']
  %s0 = inlined_call_operand.vmem [shape: f32[384,32], index: 0, kind: input, shape index: {}]
  %s1 = inlined_call_operand.vmem [shape: f32[384,32], index: 1, kind: input, shape index: {}]
  %s2 = inlined_call_operand.vmem [shape: f32[32,32], index: 2, kind: input, shape index: {}]
  %s3 = inlined_call_operand.vmem [shape: f32[32,32], index: 3, kind: input, shape index: {}]
  %s4 = inlined_call_operand.vmem [shape: f32[1,32], index: 4, kind: input, shape index: {}]
  %s5 = inlined_call_operand.vmem [shape: f32[1,32], index: 5, kind: input, shape index: {}]
  %s6 = inlined_call_operand.<no memory space> [shape: f32[1], index: 6, kind: input, shape index: {}]
  %s7 = inlined_call_operand.hbm [shape: f32[1,1,384], index: 7, kind: output, shape index: {}]
  %s8 = sld [smem:[#allocation0]]
  $region38: #{tpu_custom_call.1} parent=0
    _
  %s10 = ssub.s32 1, %s8
  %s11 = scalar_select 0, %s10, %s8
  %12 = sst [smem:[#allocation2]] %s6
  $region1: #{tpu_custom_call.1} parent=0
    #allocation3 [shape = 'u8[1536]{0}', space=vmem, size = 0x800, scoped, tag = 'output window, operand 0, single buffered']
    #allocation4 [shape = 's32[1]{0}', space=sflag, size = 0x4, scoped, tag = 'scoped memory for tpu_custom_call.1']
    %13 = vsyncpa [#allocation4], 0
    // Predicated region
    $region2: #{tpu_custom_call.1} parent=1 // pred_check
      _
    $region3: #{tpu_custom_call.1} parent=1 // pred_check_branch
      %15 = sbr.rel (0) target = $region5
    $region4: #{tpu_custom_call.1} parent=1 // pred_region
      _
    $region5: #{tpu_custom_call.1} parent=1 // pred_fallthru
      _
    // Predicated region
    $region6: #{tpu_custom_call.1} parent=1 // pred_check
      _
    $region7: #{tpu_custom_call.1} parent=1 // pred_check_branch
      %17 = sbr.rel (0) target = $region9
    $region8: #{tpu_custom_call.1} parent=1 // pred_region
      _
    $region9: #{tpu_custom_call.1} parent=1 // pred_fallthru
      _
    // Predicated region
    $region10: #{tpu_custom_call.1} parent=1 // pred_check
      _
    $region11: #{tpu_custom_call.1} parent=1 // pred_check_branch
      %19 = sbr.rel (0) target = $region13
    $region12: #{tpu_custom_call.1} parent=1 // pred_region
      _
    $region13: #{tpu_custom_call.1} parent=1 // pred_fallthru
      _
    // Predicated region
    $region14: #{tpu_custom_call.1} parent=1 // pred_check
      _
    $region15: #{tpu_custom_call.1} parent=1 // pred_check_branch
      %21 = sbr.rel (0) target = $region17
    $region16: #{tpu_custom_call.1} parent=1 // pred_region
      _
    $region17: #{tpu_custom_call.1} parent=1 // pred_fallthru
      _
    // Predicated region
    $region18: #{tpu_custom_call.1} parent=1 // pred_check
      _
    $region19: #{tpu_custom_call.1} parent=1 // pred_check_branch
      %23 = sbr.rel (0) target = $region21
    $region20: #{tpu_custom_call.1} parent=1 // pred_region
      _
    $region21: #{tpu_custom_call.1} parent=1 // pred_fallthru
      _
    // Predicated region
    $region22: #{tpu_custom_call.1} parent=1 // pred_check
      _
    $region23: #{tpu_custom_call.1} parent=1 // pred_check_branch
      %25 = sbr.rel (0) target = $region25
    $region24: #{tpu_custom_call.1} parent=1 // pred_region
      _
    $region25: #{tpu_custom_call.1} parent=1 // pred_fallthru
      _
    // Predicated region
    $region26: #{tpu_custom_call.1} parent=1 // pred_check
      _
    $region27: #{tpu_custom_call.1} parent=1 // pred_check_branch
      %27 = sbr.rel (0) target = $region29
    $region28: #{tpu_custom_call.1} parent=1 // pred_region
      _
    $region29: #{tpu_custom_call.1} parent=1 // pred_fallthru
      _
    %v28 = vld [vmem:[%s0] sm:$0xff]
    %v29 = vld [vmem:[%s0 + $0x8] sm:$0xff]
    %v30 = vld [vmem:[%s0 + $0x10] sm:$0xff]
    %v31 = vld [vmem:[%s0 + $0x18] sm:$0xff]
    %v32 = vld [vmem:[%s0 + $0x20] sm:$0xff]
    %v33 = vld [vmem:[%s0 + $0x28] sm:$0xff]
    %v34 = vld [vmem:[%s0 + $0x30] sm:$0xff]
    %v35 = vld [vmem:[%s0 + $0x38] sm:$0xff]
    %v36 = vld [vmem:[%s0 + $0x40] sm:$0xff]
    %v37 = vld [vmem:[%s0 + $0x48] sm:$0xff]
    %v38 = vld [vmem:[%s0 + $0x50] sm:$0xff]
    %v39 = vld [vmem:[%s0 + $0x58] sm:$0xff]
    %v40 = vld [vmem:[%s0 + $0x60] sm:$0xff]
    %v41 = vld [vmem:[%s0 + $0x68] sm:$0xff]
    %v42 = vld [vmem:[%s0 + $0x70] sm:$0xff]
    %v43 = vld [vmem:[%s0 + $0x78] sm:$0xff]
    %v44 = vld [vmem:[%s0 + $0x80] sm:$0xff]
    %v45 = vld [vmem:[%s0 + $0x88] sm:$0xff]
    %v46 = vld [vmem:[%s0 + $0x90] sm:$0xff]
    %v47 = vld [vmem:[%s0 + $0x98] sm:$0xff]
    %v48 = vld [vmem:[%s0 + $0xa0] sm:$0xff]
    %v49 = vld [vmem:[%s0 + $0xa8] sm:$0xff]
    %v50 = vld [vmem:[%s0 + $0xb0] sm:$0xff]
    %v51 = vld [vmem:[%s0 + $0xb8] sm:$0xff]
    %v52 = vld [vmem:[%s0 + $0xc0] sm:$0xff]
    %v53 = vld [vmem:[%s0 + $0xc8] sm:$0xff]
    %v54 = vld [vmem:[%s0 + $0xd0] sm:$0xff]
    %v55 = vld [vmem:[%s0 + $0xd8] sm:$0xff]
    %v56 = vld [vmem:[%s0 + $0xe0] sm:$0xff]
    %v57 = vld [vmem:[%s0 + $0xe8] sm:$0xff]
    %v58 = vld [vmem:[%s0 + $0xf0] sm:$0xff]
    %v59 = vld [vmem:[%s0 + $0xf8] sm:$0xff]
    %v60 = vld [vmem:[%s0 + $0x100] sm:$0xff]
    %v61 = vld [vmem:[%s0 + $0x108] sm:$0xff]
    %v62 = vld [vmem:[%s0 + $0x110] sm:$0xff]
    %v63 = vld [vmem:[%s0 + $0x118] sm:$0xff]
    %v64 = vld [vmem:[%s0 + $0x120] sm:$0xff]
    %v65 = vld [vmem:[%s0 + $0x128] sm:$0xff]
    %v66 = vld [vmem:[%s0 + $0x130] sm:$0xff]
    %v67 = vld [vmem:[%s0 + $0x138] sm:$0xff]
    %v68 = vld [vmem:[%s0 + $0x140] sm:$0xff]
    %v69 = vld [vmem:[%s0 + $0x148] sm:$0xff]
    %v70 = vld [vmem:[%s0 + $0x150] sm:$0xff]
    %v71 = vld [vmem:[%s0 + $0x158] sm:$0xff]
    %v72 = vld [vmem:[%s0 + $0x160] sm:$0xff]
    %v73 = vld [vmem:[%s0 + $0x168] sm:$0xff]
    %v74 = vld [vmem:[%s0 + $0x170] sm:$0xff]
    %v75 = vld [vmem:[%s0 + $0x178] sm:$0xff]
    %v76 = vld [vmem:[%s2] sm:$0xff]
    %v77 = vld [vmem:[%s2 + $0x8] sm:$0xff]
    %v78 = vld [vmem:[%s2 + $0x10] sm:$0xff]
    %v79 = vld [vmem:[%s2 + $0x18] sm:$0xff]
    %v80 = vld [vmem:[%s1] sm:$0xff]
    %v81 = vld [vmem:[%s1 + $0x8] sm:$0xff]
    %v82 = vld [vmem:[%s1 + $0x10] sm:$0xff]
    %v83 = vld [vmem:[%s1 + $0x18] sm:$0xff]
    %v84 = vld [vmem:[%s1 + $0x20] sm:$0xff]
    %v85 = vld [vmem:[%s1 + $0x28] sm:$0xff]
    %v86 = vld [vmem:[%s1 + $0x30] sm:$0xff]
    %v87 = vld [vmem:[%s1 + $0x38] sm:$0xff]
    %v88 = vld [vmem:[%s1 + $0x40] sm:$0xff]
    %v89 = vld [vmem:[%s1 + $0x48] sm:$0xff]
    %v90 = vld [vmem:[%s1 + $0x50] sm:$0xff]
    %v91 = vld [vmem:[%s1 + $0x58] sm:$0xff]
    %v92 = vld [vmem:[%s1 + $0x60] sm:$0xff]
    %v93 = vld [vmem:[%s1 + $0x68] sm:$0xff]
    %v94 = vld [vmem:[%s1 + $0x70] sm:$0xff]
    %v95 = vld [vmem:[%s1 + $0x78] sm:$0xff]
    %v96 = vld [vmem:[%s1 + $0x80] sm:$0xff]
    %v97 = vld [vmem:[%s1 + $0x88] sm:$0xff]
    %v98 = vld [vmem:[%s1 + $0x90] sm:$0xff]
    %v99 = vld [vmem:[%s1 + $0x98] sm:$0xff]
    %v100 = vld [vmem:[%s1 + $0xa0] sm:$0xff]
    %v101 = vld [vmem:[%s1 + $0xa8] sm:$0xff]
    %v102 = vld [vmem:[%s1 + $0xb0] sm:$0xff]
    %v103 = vld [vmem:[%s1 + $0xb8] sm:$0xff]
    %v104 = vld [vmem:[%s1 + $0xc0] sm:$0xff]
    %v105 = vld [vmem:[%s1 + $0xc8] sm:$0xff]
    %v106 = vld [vmem:[%s1 + $0xd0] sm:$0xff]
    %v107 = vld [vmem:[%s1 + $0xd8] sm:$0xff]
    %v108 = vld [vmem:[%s1 + $0xe0] sm:$0xff]
    %v109 = vld [vmem:[%s1 + $0xe8] sm:$0xff]
    %v110 = vld [vmem:[%s1 + $0xf0] sm:$0xff]
    %v111 = vld [vmem:[%s1 + $0xf8] sm:$0xff]
    %v112 = vld [vmem:[%s1 + $0x100] sm:$0xff]
    %v113 = vld [vmem:[%s1 + $0x108] sm:$0xff]
    %v114 = vld [vmem:[%s1 + $0x110] sm:$0xff]
    %v115 = vld [vmem:[%s1 + $0x118] sm:$0xff]
    %v116 = vld [vmem:[%s1 + $0x120] sm:$0xff]
    %v117 = vld [vmem:[%s1 + $0x128] sm:$0xff]
    %v118 = vld [vmem:[%s1 + $0x130] sm:$0xff]
    %v119 = vld [vmem:[%s1 + $0x138] sm:$0xff]
    %v120 = vld [vmem:[%s1 + $0x140] sm:$0xff]
    %v121 = vld [vmem:[%s1 + $0x148] sm:$0xff]
    %v122 = vld [vmem:[%s1 + $0x150] sm:$0xff]
    %v123 = vld [vmem:[%s1 + $0x158] sm:$0xff]
    %v124 = vld [vmem:[%s1 + $0x160] sm:$0xff]
    %v125 = vld [vmem:[%s1 + $0x168] sm:$0xff]
    %v126 = vld [vmem:[%s1 + $0x170] sm:$0xff]
    %v127 = vld [vmem:[%s1 + $0x178] sm:$0xff]
    %v128 = vld [vmem:[%s3] sm:$0xff]
    %v129 = vld [vmem:[%s3 + $0x8] sm:$0xff]
    %v130 = vld [vmem:[%s3 + $0x10] sm:$0xff]
    %v131 = vld [vmem:[%s3 + $0x18] sm:$0xff]
    %vm132 = vcmask 261120
    %v134 = vsel %vm132, %v80, 0
    %v137 = vsel %vm132, %v81, 0
    %v140 = vsel %vm132, %v82, 0
    %v143 = vsel %vm132, %v83, 0
    %v146 = vsel %vm132, %v84, 0
    %v149 = vsel %vm132, %v85, 0
    %v152 = vsel %vm132, %v86, 0
    %v155 = vsel %vm132, %v87, 0
    %v158 = vsel %vm132, %v88, 0
    %v161 = vsel %vm132, %v89, 0
    %v164 = vsel %vm132, %v90, 0
    %v167 = vsel %vm132, %v91, 0
    %v170 = vsel %vm132, %v92, 0
    %v173 = vsel %vm132, %v93, 0
    %v176 = vsel %vm132, %v94, 0
    %v179 = vsel %vm132, %v95, 0
    %v182 = vsel %vm132, %v96, 0
    %v185 = vsel %vm132, %v97, 0
    %v188 = vsel %vm132, %v98, 0
    %v191 = vsel %vm132, %v99, 0
    %v194 = vsel %vm132, %v100, 0
    %v197 = vsel %vm132, %v101, 0
    %v200 = vsel %vm132, %v102, 0
    %v203 = vsel %vm132, %v103, 0
    %v206 = vsel %vm132, %v104, 0
    %v209 = vsel %vm132, %v105, 0
    %v212 = vsel %vm132, %v106, 0
    %v215 = vsel %vm132, %v107, 0
    %v218 = vsel %vm132, %v108, 0
    %v221 = vsel %vm132, %v109, 0
    %v224 = vsel %vm132, %v110, 0
    %v227 = vsel %vm132, %v111, 0
    %v230 = vsel %vm132, %v112, 0
    %v233 = vsel %vm132, %v113, 0
    %v236 = vsel %vm132, %v114, 0
    %v239 = vsel %vm132, %v115, 0
    %v242 = vsel %vm132, %v116, 0
    %v245 = vsel %vm132, %v117, 0
    %v248 = vsel %vm132, %v118, 0
    %v251 = vsel %vm132, %v119, 0
    %v254 = vsel %vm132, %v120, 0
    %v257 = vsel %vm132, %v121, 0
    %v260 = vsel %vm132, %v122, 0
    %v263 = vsel %vm132, %v123, 0
    %v266 = vsel %vm132, %v124, 0
    %v269 = vsel %vm132, %v125, 0
    %v272 = vsel %vm132, %v126, 0
    %v275 = vsel %vm132, %v127, 0
    %277 = vmatpush.msra.mxu0 0.0
    %278 = vmatpush.msra.mxu0 0.0
    %279 = vmatpush.msra.mxu0 0.0
    %280 = vmatpush.msra.mxu0 0.0
    %281 = vmatpush.msra.mxu0 0.0
    %282 = vmatpush.msra.mxu0 0.0
    %283 = vmatpush.msra.mxu0 0.0
    %284 = vmatpush.msra.mxu0 0.0
    %285 = vmatpush.msra.mxu0 0.0
    %286 = vmatpush.msra.mxu0 0.0
    %287 = vmatpush.msra.mxu0 0.0
    %288 = vmatpush.msra.mxu0 0.0
    %289 = vmatpush.msra.mxu0 %v131
    %290 = vmatpush.msra.mxu0 %v130
    %291 = vmatpush.msra.mxu0 %v129
    %292 = vmatpush.msra.mxu0 %v128
    %293 = vmatmul.f32.gmra.mxu0 %v134
    %v294 = vpop.f32.mrf.mxu0
    %v295 = vadd.f32 0.0, %v294
    %296 = vmatmul.f32.gmra.mxu0 %v137
    %v297 = vpop.f32.mrf.mxu0
    %v298 = vadd.f32 0.0, %v297
    %299 = vmatmul.f32.gmra.mxu0 %v140
    %v300 = vpop.f32.mrf.mxu0
    %v301 = vadd.f32 0.0, %v300
    %302 = vmatmul.f32.gmra.mxu0 %v143
    %v303 = vpop.f32.mrf.mxu0
    %v304 = vadd.f32 0.0, %v303
    %305 = vmatmul.f32.gmra.mxu0 %v146
    %v306 = vpop.f32.mrf.mxu0
    %v307 = vadd.f32 0.0, %v306
    %308 = vmatmul.f32.gmra.mxu0 %v149
    %v309 = vpop.f32.mrf.mxu0
    %v310 = vadd.f32 0.0, %v309
    %311 = vmatmul.f32.gmra.mxu0 %v152
    %v312 = vpop.f32.mrf.mxu0
    %v313 = vadd.f32 0.0, %v312
    %314 = vmatmul.f32.gmra.mxu0 %v155
    %v315 = vpop.f32.mrf.mxu0
    %v316 = vadd.f32 0.0, %v315
    %317 = vmatmul.f32.gmra.mxu0 %v158
    %v318 = vpop.f32.mrf.mxu0
    %v319 = vadd.f32 0.0, %v318
    %320 = vmatmul.f32.gmra.mxu0 %v161
    %v321 = vpop.f32.mrf.mxu0
    %v322 = vadd.f32 0.0, %v321
    %323 = vmatmul.f32.gmra.mxu0 %v164
    %v324 = vpop.f32.mrf.mxu0
    %v325 = vadd.f32 0.0, %v324
    %326 = vmatmul.f32.gmra.mxu0 %v167
    %v327 = vpop.f32.mrf.mxu0
    %v328 = vadd.f32 0.0, %v327
    %329 = vmatmul.f32.gmra.mxu0 %v170
    %v330 = vpop.f32.mrf.mxu0
    %v331 = vadd.f32 0.0, %v330
    %332 = vmatmul.f32.gmra.mxu0 %v173
    %v333 = vpop.f32.mrf.mxu0
    %v334 = vadd.f32 0.0, %v333
    %335 = vmatmul.f32.gmra.mxu0 %v176
    %v336 = vpop.f32.mrf.mxu0
    %v337 = vadd.f32 0.0, %v336
    %338 = vmatmul.f32.gmra.mxu0 %v179
    %v339 = vpop.f32.mrf.mxu0
    %v340 = vadd.f32 0.0, %v339
    %341 = vmatmul.f32.gmra.mxu0 %v182
    %v342 = vpop.f32.mrf.mxu0
    %v343 = vadd.f32 0.0, %v342
    %344 = vmatmul.f32.gmra.mxu0 %v185
    %v345 = vpop.f32.mrf.mxu0
    %v346 = vadd.f32 0.0, %v345
    %347 = vmatmul.f32.gmra.mxu0 %v188
    %v348 = vpop.f32.mrf.mxu0
    %v349 = vadd.f32 0.0, %v348
    %350 = vmatmul.f32.gmra.mxu0 %v191
    %v351 = vpop.f32.mrf.mxu0
    %v352 = vadd.f32 0.0, %v351
    %353 = vmatmul.f32.gmra.mxu0 %v194
    %v354 = vpop.f32.mrf.mxu0
    %v355 = vadd.f32 0.0, %v354
    %356 = vmatmul.f32.gmra.mxu0 %v197
    %v357 = vpop.f32.mrf.mxu0
    %v358 = vadd.f32 0.0, %v357
    %359 = vmatmul.f32.gmra.mxu0 %v200
    %v360 = vpop.f32.mrf.mxu0
    %v361 = vadd.f32 0.0, %v360
    %362 = vmatmul.f32.gmra.mxu0 %v203
    %v363 = vpop.f32.mrf.mxu0
    %v364 = vadd.f32 0.0, %v363
    %365 = vmatmul.f32.gmra.mxu0 %v206
    %v366 = vpop.f32.mrf.mxu0
    %v367 = vadd.f32 0.0, %v366
    %368 = vmatmul.f32.gmra.mxu0 %v209
    %v369 = vpop.f32.mrf.mxu0
    %v370 = vadd.f32 0.0, %v369
    %371 = vmatmul.f32.gmra.mxu0 %v212
    %v372 = vpop.f32.mrf.mxu0
    %v373 = vadd.f32 0.0, %v372
    %374 = vmatmul.f32.gmra.mxu0 %v215
    %v375 = vpop.f32.mrf.mxu0
    %v376 = vadd.f32 0.0, %v375
    %377 = vmatmul.f32.gmra.mxu0 %v218
    %v378 = vpop.f32.mrf.mxu0
    %v379 = vadd.f32 0.0, %v378
    %380 = vmatmul.f32.gmra.mxu0 %v221
    %v381 = vpop.f32.mrf.mxu0
    %v382 = vadd.f32 0.0, %v381
    %383 = vmatmul.f32.gmra.mxu0 %v224
    %v384 = vpop.f32.mrf.mxu0
    %v385 = vadd.f32 0.0, %v384
    %386 = vmatmul.f32.gmra.mxu0 %v227
    %v387 = vpop.f32.mrf.mxu0
    %v388 = vadd.f32 0.0, %v387
    %389 = vmatmul.f32.gmra.mxu0 %v230
    %v390 = vpop.f32.mrf.mxu0
    %v391 = vadd.f32 0.0, %v390
    %392 = vmatmul.f32.gmra.mxu0 %v233
    %v393 = vpop.f32.mrf.mxu0
    %v394 = vadd.f32 0.0, %v393
    %395 = vmatmul.f32.gmra.mxu0 %v236
    %v396 = vpop.f32.mrf.mxu0
    %v397 = vadd.f32 0.0, %v396
    %398 = vmatmul.f32.gmra.mxu0 %v239
    %v399 = vpop.f32.mrf.mxu0
    %v400 = vadd.f32 0.0, %v399
    %401 = vmatmul.f32.gmra.mxu0 %v242
    %v402 = vpop.f32.mrf.mxu0
    %v403 = vadd.f32 0.0, %v402
    %404 = vmatmul.f32.gmra.mxu0 %v245
    %v405 = vpop.f32.mrf.mxu0
    %v406 = vadd.f32 0.0, %v405
    %407 = vmatmul.f32.gmra.mxu0 %v248
    %v408 = vpop.f32.mrf.mxu0
    %v409 = vadd.f32 0.0, %v408
    %410 = vmatmul.f32.gmra.mxu0 %v251
    %v411 = vpop.f32.mrf.mxu0
    %v412 = vadd.f32 0.0, %v411
    %413 = vmatmul.f32.gmra.mxu0 %v254
    %v414 = vpop.f32.mrf.mxu0
    %v415 = vadd.f32 0.0, %v414
    %416 = vmatmul.f32.gmra.mxu0 %v257
    %v417 = vpop.f32.mrf.mxu0
    %v418 = vadd.f32 0.0, %v417
    %419 = vmatmul.f32.gmra.mxu0 %v260
    %v420 = vpop.f32.mrf.mxu0
    %v421 = vadd.f32 0.0, %v420
    %422 = vmatmul.f32.gmra.mxu0 %v263
    %v423 = vpop.f32.mrf.mxu0
    %v424 = vadd.f32 0.0, %v423
    %425 = vmatmul.f32.gmra.mxu0 %v266
    %v426 = vpop.f32.mrf.mxu0
    %v427 = vadd.f32 0.0, %v426
    %428 = vmatmul.f32.gmra.mxu0 %v269
    %v429 = vpop.f32.mrf.mxu0
    %v430 = vadd.f32 0.0, %v429
    %431 = vmatmul.f32.gmra.mxu0 %v272
    %v432 = vpop.f32.mrf.mxu0
    %v433 = vadd.f32 0.0, %v432
    %434 = vmatmul.f32.gmra.mxu0 %v275
    %v435 = vpop.f32.mrf.mxu0
    %v436 = vadd.f32 0.0, %v435
    %437 = vdwg.mxu0
    %v439 = vsel %vm132, %v28, 0
    %v442 = vsel %vm132, %v29, 0
    %v445 = vsel %vm132, %v30, 0
    %v448 = vsel %vm132, %v31, 0
    %v451 = vsel %vm132, %v32, 0
    %v454 = vsel %vm132, %v33, 0
    %v457 = vsel %vm132, %v34, 0
    %v460 = vsel %vm132, %v35, 0
    %v463 = vsel %vm132, %v36, 0
    %v466 = vsel %vm132, %v37, 0
    %v469 = vsel %vm132, %v38, 0
    %v472 = vsel %vm132, %v39, 0
    %v475 = vsel %vm132, %v40, 0
    %v478 = vsel %vm132, %v41, 0
    %v481 = vsel %vm132, %v42, 0
    %v484 = vsel %vm132, %v43, 0
    %v487 = vsel %vm132, %v44, 0
    %v490 = vsel %vm132, %v45, 0
    %v493 = vsel %vm132, %v46, 0
    %v496 = vsel %vm132, %v47, 0
    %v499 = vsel %vm132, %v48, 0
    %v502 = vsel %vm132, %v49, 0
    %v505 = vsel %vm132, %v50, 0
    %v508 = vsel %vm132, %v51, 0
    %v511 = vsel %vm132, %v52, 0
    %v514 = vsel %vm132, %v53, 0
    %v517 = vsel %vm132, %v54, 0
    %v520 = vsel %vm132, %v55, 0
    %v523 = vsel %vm132, %v56, 0
    %v526 = vsel %vm132, %v57, 0
    %v529 = vsel %vm132, %v58, 0
    %v532 = vsel %vm132, %v59, 0
    %v535 = vsel %vm132, %v60, 0
    %v538 = vsel %vm132, %v61, 0
    %v541 = vsel %vm132, %v62, 0
    %v544 = vsel %vm132, %v63, 0
    %v547 = vsel %vm132, %v64, 0
    %v550 = vsel %vm132, %v65, 0
    %v553 = vsel %vm132, %v66, 0
    %v556 = vsel %vm132, %v67, 0
    %v559 = vsel %vm132, %v68, 0
    %v562 = vsel %vm132, %v69, 0
    %v565 = vsel %vm132, %v70, 0
    %v568 = vsel %vm132, %v71, 0
    %v571 = vsel %vm132, %v72, 0
    %v574 = vsel %vm132, %v73, 0
    %v577 = vsel %vm132, %v74, 0
    %v580 = vsel %vm132, %v75, 0
    %582 = vmatpush.msra.mxu0 0.0
    %583 = vmatpush.msra.mxu0 0.0
    %584 = vmatpush.msra.mxu0 0.0
    %585 = vmatpush.msra.mxu0 0.0
    %586 = vmatpush.msra.mxu0 0.0
    %587 = vmatpush.msra.mxu0 0.0
    %588 = vmatpush.msra.mxu0 0.0
    %589 = vmatpush.msra.mxu0 0.0
    %590 = vmatpush.msra.mxu0 0.0
    %591 = vmatpush.msra.mxu0 0.0
    %592 = vmatpush.msra.mxu0 0.0
    %593 = vmatpush.msra.mxu0 0.0
    %594 = vmatpush.msra.mxu0 %v79
    %595 = vmatpush.msra.mxu0 %v78
    %596 = vmatpush.msra.mxu0 %v77
    %597 = vmatpush.msra.mxu0 %v76
    %598 = vmatmul.f32.gmra.mxu0 %v439
    %v599 = vpop.f32.mrf.mxu0
    %v600 = vadd.f32 %v295, %v599
    %601 = vmatmul.f32.gmra.mxu0 %v442
    %v602 = vpop.f32.mrf.mxu0
    %v603 = vadd.f32 %v298, %v602
    %604 = vmatmul.f32.gmra.mxu0 %v445
    %v605 = vpop.f32.mrf.mxu0
    %v606 = vadd.f32 %v301, %v605
    %607 = vmatmul.f32.gmra.mxu0 %v448
    %v608 = vpop.f32.mrf.mxu0
    %v609 = vadd.f32 %v304, %v608
    %610 = vmatmul.f32.gmra.mxu0 %v451
    %v611 = vpop.f32.mrf.mxu0
    %v612 = vadd.f32 %v307, %v611
    %613 = vmatmul.f32.gmra.mxu0 %v454
    %v614 = vpop.f32.mrf.mxu0
    %v615 = vadd.f32 %v310, %v614
    %616 = vmatmul.f32.gmra.mxu0 %v457
    %v617 = vpop.f32.mrf.mxu0
    %v618 = vadd.f32 %v313, %v617
    %619 = vmatmul.f32.gmra.mxu0 %v460
    %v620 = vpop.f32.mrf.mxu0
    %v621 = vadd.f32 %v316, %v620
    %622 = vmatmul.f32.gmra.mxu0 %v463
    %v623 = vpop.f32.mrf.mxu0
    %v624 = vadd.f32 %v319, %v623
    %625 = vmatmul.f32.gmra.mxu0 %v466
    %v626 = vpop.f32.mrf.mxu0
    %v627 = vadd.f32 %v322, %v626
    %628 = vmatmul.f32.gmra.mxu0 %v469
    %v629 = vpop.f32.mrf.mxu0
    %v630 = vadd.f32 %v325, %v629
    %631 = vmatmul.f32.gmra.mxu0 %v472
    %v632 = vpop.f32.mrf.mxu0
    %v633 = vadd.f32 %v328, %v632
    %634 = vmatmul.f32.gmra.mxu0 %v475
    %v635 = vpop.f32.mrf.mxu0
    %v636 = vadd.f32 %v331, %v635
    %637 = vmatmul.f32.gmra.mxu0 %v478
    %v638 = vpop.f32.mrf.mxu0
    %v639 = vadd.f32 %v334, %v638
    %640 = vmatmul.f32.gmra.mxu0 %v481
    %v641 = vpop.f32.mrf.mxu0
    %v642 = vadd.f32 %v337, %v641
    %643 = vmatmul.f32.gmra.mxu0 %v484
    %v644 = vpop.f32.mrf.mxu0
    %v645 = vadd.f32 %v340, %v644
    %646 = vmatmul.f32.gmra.mxu0 %v487
    %v647 = vpop.f32.mrf.mxu0
    %v648 = vadd.f32 %v343, %v647
    %649 = vmatmul.f32.gmra.mxu0 %v490
    %v650 = vpop.f32.mrf.mxu0
    %v651 = vadd.f32 %v346, %v650
    %652 = vmatmul.f32.gmra.mxu0 %v493
    %v653 = vpop.f32.mrf.mxu0
    %v654 = vadd.f32 %v349, %v653
    %655 = vmatmul.f32.gmra.mxu0 %v496
    %v656 = vpop.f32.mrf.mxu0
    %v657 = vadd.f32 %v352, %v656
    %658 = vmatmul.f32.gmra.mxu0 %v499
    %v659 = vpop.f32.mrf.mxu0
    %v660 = vadd.f32 %v355, %v659
    %661 = vmatmul.f32.gmra.mxu0 %v502
    %v662 = vpop.f32.mrf.mxu0
    %v663 = vadd.f32 %v358, %v662
    %664 = vmatmul.f32.gmra.mxu0 %v505
    %v665 = vpop.f32.mrf.mxu0
    %v666 = vadd.f32 %v361, %v665
    %667 = vmatmul.f32.gmra.mxu0 %v508
    %v668 = vpop.f32.mrf.mxu0
    %v669 = vadd.f32 %v364, %v668
    %670 = vmatmul.f32.gmra.mxu0 %v511
    %v671 = vpop.f32.mrf.mxu0
    %v672 = vadd.f32 %v367, %v671
    %673 = vmatmul.f32.gmra.mxu0 %v514
    %v674 = vpop.f32.mrf.mxu0
    %v675 = vadd.f32 %v370, %v674
    %676 = vmatmul.f32.gmra.mxu0 %v517
    %v677 = vpop.f32.mrf.mxu0
    %v678 = vadd.f32 %v373, %v677
    %679 = vmatmul.f32.gmra.mxu0 %v520
    %v680 = vpop.f32.mrf.mxu0
    %v681 = vadd.f32 %v376, %v680
    %682 = vmatmul.f32.gmra.mxu0 %v523
    %v683 = vpop.f32.mrf.mxu0
    %v684 = vadd.f32 %v379, %v683
    %685 = vmatmul.f32.gmra.mxu0 %v526
    %v686 = vpop.f32.mrf.mxu0
    %v687 = vadd.f32 %v382, %v686
    %688 = vmatmul.f32.gmra.mxu0 %v529
    %v689 = vpop.f32.mrf.mxu0
    %v690 = vadd.f32 %v385, %v689
    %691 = vmatmul.f32.gmra.mxu0 %v532
    %v692 = vpop.f32.mrf.mxu0
    %v693 = vadd.f32 %v388, %v692
    %694 = vmatmul.f32.gmra.mxu0 %v535
    %v695 = vpop.f32.mrf.mxu0
    %v696 = vadd.f32 %v391, %v695
    %697 = vmatmul.f32.gmra.mxu0 %v538
    %v698 = vpop.f32.mrf.mxu0
    %v699 = vadd.f32 %v394, %v698
    %700 = vmatmul.f32.gmra.mxu0 %v541
    %v701 = vpop.f32.mrf.mxu0
    %v702 = vadd.f32 %v397, %v701
    %703 = vmatmul.f32.gmra.mxu0 %v544
    %v704 = vpop.f32.mrf.mxu0
    %v705 = vadd.f32 %v400, %v704
    %706 = vmatmul.f32.gmra.mxu0 %v547
    %v707 = vpop.f32.mrf.mxu0
    %v708 = vadd.f32 %v403, %v707
    %709 = vmatmul.f32.gmra.mxu0 %v550
    %v710 = vpop.f32.mrf.mxu0
    %v711 = vadd.f32 %v406, %v710
    %712 = vmatmul.f32.gmra.mxu0 %v553
    %v713 = vpop.f32.mrf.mxu0
    %v714 = vadd.f32 %v409, %v713
    %715 = vmatmul.f32.gmra.mxu0 %v556
    %v716 = vpop.f32.mrf.mxu0
    %v717 = vadd.f32 %v412, %v716
    %718 = vmatmul.f32.gmra.mxu0 %v559
    %v719 = vpop.f32.mrf.mxu0
    %v720 = vadd.f32 %v415, %v719
    %721 = vmatmul.f32.gmra.mxu0 %v562
    %v722 = vpop.f32.mrf.mxu0
    %v723 = vadd.f32 %v418, %v722
    %724 = vmatmul.f32.gmra.mxu0 %v565
    %v725 = vpop.f32.mrf.mxu0
    %v726 = vadd.f32 %v421, %v725
    %727 = vmatmul.f32.gmra.mxu0 %v568
    %v728 = vpop.f32.mrf.mxu0
    %v729 = vadd.f32 %v424, %v728
    %730 = vmatmul.f32.gmra.mxu0 %v571
    %v731 = vpop.f32.mrf.mxu0
    %v732 = vadd.f32 %v427, %v731
    %733 = vmatmul.f32.gmra.mxu0 %v574
    %v734 = vpop.f32.mrf.mxu0
    %v735 = vadd.f32 %v430, %v734
    %736 = vmatmul.f32.gmra.mxu0 %v577
    %v737 = vpop.f32.mrf.mxu0
    %v738 = vadd.f32 %v433, %v737
    %739 = vmatmul.f32.gmra.mxu0 %v580
    %v740 = vpop.f32.mrf.mxu0
    %v741 = vadd.f32 %v436, %v740
    %742 = vdwg.mxu0
    %v743 = vld [vmem:[%s4] sm:$0x1]
    %v745 = vperm.slane %v743, 0
    %v747 = vadd.f32 %v600, %v745
    %v748 = vadd.f32 %v603, %v745
    %v749 = vadd.f32 %v606, %v745
    %v750 = vadd.f32 %v609, %v745
    %v751 = vadd.f32 %v612, %v745
    %v752 = vadd.f32 %v615, %v745
    %v753 = vadd.f32 %v618, %v745
    %v754 = vadd.f32 %v621, %v745
    %v755 = vadd.f32 %v624, %v745
    %v756 = vadd.f32 %v627, %v745
    %v757 = vadd.f32 %v630, %v745
    %v758 = vadd.f32 %v633, %v745
    %v759 = vadd.f32 %v636, %v745
    %v760 = vadd.f32 %v639, %v745
    %v761 = vadd.f32 %v642, %v745
    %v762 = vadd.f32 %v645, %v745
    %v763 = vadd.f32 %v648, %v745
    %v764 = vadd.f32 %v651, %v745
    %v765 = vadd.f32 %v654, %v745
    %v766 = vadd.f32 %v657, %v745
    %v767 = vadd.f32 %v660, %v745
    %v768 = vadd.f32 %v663, %v745
    %v769 = vadd.f32 %v666, %v745
    %v770 = vadd.f32 %v669, %v745
    %v771 = vadd.f32 %v672, %v745
    %v772 = vadd.f32 %v675, %v745
    %v773 = vadd.f32 %v678, %v745
    %v774 = vadd.f32 %v681, %v745
    %v775 = vadd.f32 %v684, %v745
    %v776 = vadd.f32 %v687, %v745
    %v777 = vadd.f32 %v690, %v745
    %v778 = vadd.f32 %v693, %v745
    %v779 = vadd.f32 %v696, %v745
    %v780 = vadd.f32 %v699, %v745
    %v781 = vadd.f32 %v702, %v745
    %v782 = vadd.f32 %v705, %v745
    %v783 = vadd.f32 %v708, %v745
    %v784 = vadd.f32 %v711, %v745
    %v785 = vadd.f32 %v714, %v745
    %v786 = vadd.f32 %v717, %v745
    %v787 = vadd.f32 %v720, %v745
    %v788 = vadd.f32 %v723, %v745
    %v789 = vadd.f32 %v726, %v745
    %v790 = vadd.f32 %v729, %v745
    %v791 = vadd.f32 %v732, %v745
    %v792 = vadd.f32 %v735, %v745
    %v793 = vadd.f32 %v738, %v745
    %v794 = vadd.f32 %v741, %v745
    %v795 = vmax.f32 %v747, 0.0
    %v796 = vmax.f32 %v748, 0.0
    %v797 = vmax.f32 %v749, 0.0
    %v798 = vmax.f32 %v750, 0.0
    %v799 = vmax.f32 %v751, 0.0
    %v800 = vmax.f32 %v752, 0.0
    %v801 = vmax.f32 %v753, 0.0
    %v802 = vmax.f32 %v754, 0.0
    %v803 = vmax.f32 %v755, 0.0
    %v804 = vmax.f32 %v756, 0.0
    %v805 = vmax.f32 %v757, 0.0
    %v806 = vmax.f32 %v758, 0.0
    %v807 = vmax.f32 %v759, 0.0
    %v808 = vmax.f32 %v760, 0.0
    %v809 = vmax.f32 %v761, 0.0
    %v810 = vmax.f32 %v762, 0.0
    %v811 = vmax.f32 %v763, 0.0
    %v812 = vmax.f32 %v764, 0.0
    %v813 = vmax.f32 %v765, 0.0
    %v814 = vmax.f32 %v766, 0.0
    %v815 = vmax.f32 %v767, 0.0
    %v816 = vmax.f32 %v768, 0.0
    %v817 = vmax.f32 %v769, 0.0
    %v818 = vmax.f32 %v770, 0.0
    %v819 = vmax.f32 %v771, 0.0
    %v820 = vmax.f32 %v772, 0.0
    %v821 = vmax.f32 %v773, 0.0
    %v822 = vmax.f32 %v774, 0.0
    %v823 = vmax.f32 %v775, 0.0
    %v824 = vmax.f32 %v776, 0.0
    %v825 = vmax.f32 %v777, 0.0
    %v826 = vmax.f32 %v778, 0.0
    %v827 = vmax.f32 %v779, 0.0
    %v828 = vmax.f32 %v780, 0.0
    %v829 = vmax.f32 %v781, 0.0
    %v830 = vmax.f32 %v782, 0.0
    %v831 = vmax.f32 %v783, 0.0
    %v832 = vmax.f32 %v784, 0.0
    %v833 = vmax.f32 %v785, 0.0
    %v834 = vmax.f32 %v786, 0.0
    %v835 = vmax.f32 %v787, 0.0
    %v836 = vmax.f32 %v788, 0.0
    %v837 = vmax.f32 %v789, 0.0
    %v838 = vmax.f32 %v790, 0.0
    %v839 = vmax.f32 %v791, 0.0
    %v840 = vmax.f32 %v792, 0.0
    %v841 = vmax.f32 %v793, 0.0
    %v842 = vmax.f32 %v794, 0.0
    %v843 = vld [vmem:[%s5] sm:$0x1]
    %v845 = vperm.slane %v843, 0
    %v847 = vmul.f32 %v795, %v845
    %v848 = vmul.f32 %v796, %v845
    %v849 = vmul.f32 %v797, %v845
    %v850 = vmul.f32 %v798, %v845
    %v851 = vmul.f32 %v799, %v845
    %v852 = vmul.f32 %v800, %v845
    %v853 = vmul.f32 %v801, %v845
    %v854 = vmul.f32 %v802, %v845
    %v855 = vmul.f32 %v803, %v845
    %v856 = vmul.f32 %v804, %v845
    %v857 = vmul.f32 %v805, %v845
    %v858 = vmul.f32 %v806, %v845
    %v859 = vmul.f32 %v807, %v845
    %v860 = vmul.f32 %v808, %v845
    %v861 = vmul.f32 %v809, %v845
    %v862 = vmul.f32 %v810, %v845
    %v863 = vmul.f32 %v811, %v845
    %v864 = vmul.f32 %v812, %v845
    %v865 = vmul.f32 %v813, %v845
    %v866 = vmul.f32 %v814, %v845
    %v867 = vmul.f32 %v815, %v845
    %v868 = vmul.f32 %v816, %v845
    %v869 = vmul.f32 %v817, %v845
    %v870 = vmul.f32 %v818, %v845
    %v871 = vmul.f32 %v819, %v845
    %v872 = vmul.f32 %v820, %v845
    %v873 = vmul.f32 %v821, %v845
    %v874 = vmul.f32 %v822, %v845
    %v875 = vmul.f32 %v823, %v845
    %v876 = vmul.f32 %v824, %v845
    %v877 = vmul.f32 %v825, %v845
    %v878 = vmul.f32 %v826, %v845
    %v879 = vmul.f32 %v827, %v845
    %v880 = vmul.f32 %v828, %v845
    %v881 = vmul.f32 %v829, %v845
    %v882 = vmul.f32 %v830, %v845
    %v883 = vmul.f32 %v831, %v845
    %v884 = vmul.f32 %v832, %v845
    %v885 = vmul.f32 %v833, %v845
    %v886 = vmul.f32 %v834, %v845
    %v887 = vmul.f32 %v835, %v845
    %v888 = vmul.f32 %v836, %v845
    %v889 = vmul.f32 %v837, %v845
    %v890 = vmul.f32 %v838, %v845
    %v891 = vmul.f32 %v839, %v845
    %v892 = vmul.f32 %v840, %v845
    %v893 = vmul.f32 %v841, %v845
    %v894 = vmul.f32 %v842, %v845
    %v895 = vsel %vm132, %v847, 0.0
    %896 = vadd.xlane.f32.xlu0 %v895
    %v897 = vpop.xlane.xlu0 %896
    %v898 = vsel %vm132, %v848, 0.0
    %899 = vadd.xlane.f32.xlu0 %v898
    %v900 = vpop.xlane.xlu0 %899
    %v901 = vsel %vm132, %v849, 0.0
    %902 = vadd.xlane.f32.xlu0 %v901
    %v903 = vpop.xlane.xlu0 %902
    %v904 = vsel %vm132, %v850, 0.0
    %905 = vadd.xlane.f32.xlu0 %v904
    %v906 = vpop.xlane.xlu0 %905
    %v907 = vsel %vm132, %v851, 0.0
    %908 = vadd.xlane.f32.xlu0 %v907
    %v909 = vpop.xlane.xlu0 %908
    %v910 = vsel %vm132, %v852, 0.0
    %911 = vadd.xlane.f32.xlu0 %v910
    %v912 = vpop.xlane.xlu0 %911
    %v913 = vsel %vm132, %v853, 0.0
    %914 = vadd.xlane.f32.xlu0 %v913
    %v915 = vpop.xlane.xlu0 %914
    %v916 = vsel %vm132, %v854, 0.0
    %917 = vadd.xlane.f32.xlu0 %v916
    %v918 = vpop.xlane.xlu0 %917
    %v919 = vsel %vm132, %v855, 0.0
    %920 = vadd.xlane.f32.xlu0 %v919
    %v921 = vpop.xlane.xlu0 %920
    %v922 = vsel %vm132, %v856, 0.0
    %923 = vadd.xlane.f32.xlu0 %v922
    %v924 = vpop.xlane.xlu0 %923
    %v925 = vsel %vm132, %v857, 0.0
    %926 = vadd.xlane.f32.xlu0 %v925
    %v927 = vpop.xlane.xlu0 %926
    %v928 = vsel %vm132, %v858, 0.0
    %929 = vadd.xlane.f32.xlu0 %v928
    %v930 = vpop.xlane.xlu0 %929
    %v931 = vsel %vm132, %v859, 0.0
    %932 = vadd.xlane.f32.xlu0 %v931
    %v933 = vpop.xlane.xlu0 %932
    %v934 = vsel %vm132, %v860, 0.0
    %935 = vadd.xlane.f32.xlu0 %v934
    %v936 = vpop.xlane.xlu0 %935
    %v937 = vsel %vm132, %v861, 0.0
    %938 = vadd.xlane.f32.xlu0 %v937
    %v939 = vpop.xlane.xlu0 %938
    %v940 = vsel %vm132, %v862, 0.0
    %941 = vadd.xlane.f32.xlu0 %v940
    %v942 = vpop.xlane.xlu0 %941
    %v943 = vsel %vm132, %v863, 0.0
    %944 = vadd.xlane.f32.xlu0 %v943
    %v945 = vpop.xlane.xlu0 %944
    %v946 = vsel %vm132, %v864, 0.0
    %947 = vadd.xlane.f32.xlu0 %v946
    %v948 = vpop.xlane.xlu0 %947
    %v949 = vsel %vm132, %v865, 0.0
    %950 = vadd.xlane.f32.xlu0 %v949
    %v951 = vpop.xlane.xlu0 %950
    %v952 = vsel %vm132, %v866, 0.0
    %953 = vadd.xlane.f32.xlu0 %v952
    %v954 = vpop.xlane.xlu0 %953
    %v955 = vsel %vm132, %v867, 0.0
    %956 = vadd.xlane.f32.xlu0 %v955
    %v957 = vpop.xlane.xlu0 %956
    %v958 = vsel %vm132, %v868, 0.0
    %959 = vadd.xlane.f32.xlu0 %v958
    %v960 = vpop.xlane.xlu0 %959
    %v961 = vsel %vm132, %v869, 0.0
    %962 = vadd.xlane.f32.xlu0 %v961
    %v963 = vpop.xlane.xlu0 %962
    %v964 = vsel %vm132, %v870, 0.0
    %965 = vadd.xlane.f32.xlu0 %v964
    %v966 = vpop.xlane.xlu0 %965
    %v967 = vsel %vm132, %v871, 0.0
    %968 = vadd.xlane.f32.xlu0 %v967
    %v969 = vpop.xlane.xlu0 %968
    %v970 = vsel %vm132, %v872, 0.0
    %971 = vadd.xlane.f32.xlu0 %v970
    %v972 = vpop.xlane.xlu0 %971
    %v973 = vsel %vm132, %v873, 0.0
    %974 = vadd.xlane.f32.xlu0 %v973
    %v975 = vpop.xlane.xlu0 %974
    %v976 = vsel %vm132, %v874, 0.0
    %977 = vadd.xlane.f32.xlu0 %v976
    %v978 = vpop.xlane.xlu0 %977
    %v979 = vsel %vm132, %v875, 0.0
    %980 = vadd.xlane.f32.xlu0 %v979
    %v981 = vpop.xlane.xlu0 %980
    %v982 = vsel %vm132, %v876, 0.0
    %983 = vadd.xlane.f32.xlu0 %v982
    %v984 = vpop.xlane.xlu0 %983
    %v985 = vsel %vm132, %v877, 0.0
    %986 = vadd.xlane.f32.xlu0 %v985
    %v987 = vpop.xlane.xlu0 %986
    %v988 = vsel %vm132, %v878, 0.0
    %989 = vadd.xlane.f32.xlu0 %v988
    %v990 = vpop.xlane.xlu0 %989
    %v991 = vsel %vm132, %v879, 0.0
    %992 = vadd.xlane.f32.xlu0 %v991
    %v993 = vpop.xlane.xlu0 %992
    %v994 = vsel %vm132, %v880, 0.0
    %995 = vadd.xlane.f32.xlu0 %v994
    %v996 = vpop.xlane.xlu0 %995
    %v997 = vsel %vm132, %v881, 0.0
    %998 = vadd.xlane.f32.xlu0 %v997
    %v999 = vpop.xlane.xlu0 %998
    %v1000 = vsel %vm132, %v882, 0.0
    %1001 = vadd.xlane.f32.xlu0 %v1000
    %v1002 = vpop.xlane.xlu0 %1001
    %v1003 = vsel %vm132, %v883, 0.0
    %1004 = vadd.xlane.f32.xlu0 %v1003
    %v1005 = vpop.xlane.xlu0 %1004
    %v1006 = vsel %vm132, %v884, 0.0
    %1007 = vadd.xlane.f32.xlu0 %v1006
    %v1008 = vpop.xlane.xlu0 %1007
    %v1009 = vsel %vm132, %v885, 0.0
    %1010 = vadd.xlane.f32.xlu0 %v1009
    %v1011 = vpop.xlane.xlu0 %1010
    %v1012 = vsel %vm132, %v886, 0.0
    %1013 = vadd.xlane.f32.xlu0 %v1012
    %v1014 = vpop.xlane.xlu0 %1013
    %v1015 = vsel %vm132, %v887, 0.0
    %1016 = vadd.xlane.f32.xlu0 %v1015
    %v1017 = vpop.xlane.xlu0 %1016
    %v1018 = vsel %vm132, %v888, 0.0
    %1019 = vadd.xlane.f32.xlu0 %v1018
    %v1020 = vpop.xlane.xlu0 %1019
    %v1021 = vsel %vm132, %v889, 0.0
    %1022 = vadd.xlane.f32.xlu0 %v1021
    %v1023 = vpop.xlane.xlu0 %1022
    %v1024 = vsel %vm132, %v890, 0.0
    %1025 = vadd.xlane.f32.xlu0 %v1024
    %v1026 = vpop.xlane.xlu0 %1025
    %v1027 = vsel %vm132, %v891, 0.0
    %1028 = vadd.xlane.f32.xlu0 %v1027
    %v1029 = vpop.xlane.xlu0 %1028
    %v1030 = vsel %vm132, %v892, 0.0
    %1031 = vadd.xlane.f32.xlu0 %v1030
    %v1032 = vpop.xlane.xlu0 %1031
    %v1033 = vsel %vm132, %v893, 0.0
    %1034 = vadd.xlane.f32.xlu0 %v1033
    %v1035 = vpop.xlane.xlu0 %1034
    %v1036 = vsel %vm132, %v894, 0.0
    %1037 = vadd.xlane.f32.xlu0 %v1036
    %v1038 = vpop.xlane.xlu0 %1037
    %s1039 = sld [smem:[#allocation2]]
    %v1040 = vstv %s1039
    %v1041 = vadd.f32 %v897, %v1040
    %v1042 = vadd.f32 %v900, %v1040
    %v1043 = vadd.f32 %v903, %v1040
    %v1044 = vadd.f32 %v906, %v1040
    %v1045 = vadd.f32 %v909, %v1040
    %v1046 = vadd.f32 %v912, %v1040
    %v1047 = vadd.f32 %v915, %v1040
    %v1048 = vadd.f32 %v918, %v1040
    %v1049 = vadd.f32 %v921, %v1040
    %v1050 = vadd.f32 %v924, %v1040
    %v1051 = vadd.f32 %v927, %v1040
    %v1052 = vadd.f32 %v930, %v1040
    %v1053 = vadd.f32 %v933, %v1040
    %v1054 = vadd.f32 %v936, %v1040
    %v1055 = vadd.f32 %v939, %v1040
    %v1056 = vadd.f32 %v942, %v1040
    %v1057 = vadd.f32 %v945, %v1040
    %v1058 = vadd.f32 %v948, %v1040
    %v1059 = vadd.f32 %v951, %v1040
    %v1060 = vadd.f32 %v954, %v1040
    %v1061 = vadd.f32 %v957, %v1040
    %v1062 = vadd.f32 %v960, %v1040
    %v1063 = vadd.f32 %v963, %v1040
    %v1064 = vadd.f32 %v966, %v1040
    %v1065 = vadd.f32 %v969, %v1040
    %v1066 = vadd.f32 %v972, %v1040
    %v1067 = vadd.f32 %v975, %v1040
    %v1068 = vadd.f32 %v978, %v1040
    %v1069 = vadd.f32 %v981, %v1040
    %v1070 = vadd.f32 %v984, %v1040
    %v1071 = vadd.f32 %v987, %v1040
    %v1072 = vadd.f32 %v990, %v1040
    %v1073 = vadd.f32 %v993, %v1040
    %v1074 = vadd.f32 %v996, %v1040
    %v1075 = vadd.f32 %v999, %v1040
    %v1076 = vadd.f32 %v1002, %v1040
    %v1077 = vadd.f32 %v1005, %v1040
    %v1078 = vadd.f32 %v1008, %v1040
    %v1079 = vadd.f32 %v1011, %v1040
    %v1080 = vadd.f32 %v1014, %v1040
    %v1081 = vadd.f32 %v1017, %v1040
    %v1082 = vadd.f32 %v1020, %v1040
    %v1083 = vadd.f32 %v1023, %v1040
    %v1084 = vadd.f32 %v1026, %v1040
    %v1085 = vadd.f32 %v1029, %v1040
    %v1086 = vadd.f32 %v1032, %v1040
    %v1087 = vadd.f32 %v1035, %v1040
    %v1088 = vadd.f32 %v1038, %v1040
    %v1137 = vperm.slane %v1041, 0
    %v1138 = vperm.slane %v1041, 1
    %v1139 = vperm.slane %v1041, 2
    %v1140 = vperm.slane %v1041, 3
    %v1141 = vperm.slane %v1041, 4
    %v1142 = vperm.slane %v1041, 5
    %v1143 = vperm.slane %v1041, 6
    %v1144 = vperm.slane %v1041, 7
    %v1145 = vperm.slane %v1042, 0
    %v1146 = vperm.slane %v1042, 1
    %v1147 = vperm.slane %v1042, 2
    %v1148 = vperm.slane %v1042, 3
    %v1149 = vperm.slane %v1042, 4
    %v1150 = vperm.slane %v1042, 5
    %v1151 = vperm.slane %v1042, 6
    %v1152 = vperm.slane %v1042, 7
    %v1153 = vperm.slane %v1043, 0
    %v1154 = vperm.slane %v1043, 1
    %v1155 = vperm.slane %v1043, 2
    %v1156 = vperm.slane %v1043, 3
    %v1157 = vperm.slane %v1043, 4
    %v1158 = vperm.slane %v1043, 5
    %v1159 = vperm.slane %v1043, 6
    %v1160 = vperm.slane %v1043, 7
    %v1161 = vperm.slane %v1044, 0
    %v1162 = vperm.slane %v1044, 1
    %v1163 = vperm.slane %v1044, 2
    %v1164 = vperm.slane %v1044, 3
    %v1165 = vperm.slane %v1044, 4
    %v1166 = vperm.slane %v1044, 5
    %v1167 = vperm.slane %v1044, 6
    %v1168 = vperm.slane %v1044, 7
    %v1169 = vperm.slane %v1045, 0
    %v1170 = vperm.slane %v1045, 1
    %v1171 = vperm.slane %v1045, 2
    %v1172 = vperm.slane %v1045, 3
    %v1173 = vperm.slane %v1045, 4
    %v1174 = vperm.slane %v1045, 5
    %v1175 = vperm.slane %v1045, 6
    %v1176 = vperm.slane %v1045, 7
    %v1177 = vperm.slane %v1046, 0
    %v1178 = vperm.slane %v1046, 1
    %v1179 = vperm.slane %v1046, 2
    %v1180 = vperm.slane %v1046, 3
    %v1181 = vperm.slane %v1046, 4
    %v1182 = vperm.slane %v1046, 5
    %v1183 = vperm.slane %v1046, 6
    %v1184 = vperm.slane %v1046, 7
    %v1185 = vperm.slane %v1047, 0
    %v1186 = vperm.slane %v1047, 1
    %v1187 = vperm.slane %v1047, 2
    %v1188 = vperm.slane %v1047, 3
    %v1189 = vperm.slane %v1047, 4
    %v1190 = vperm.slane %v1047, 5
    %v1191 = vperm.slane %v1047, 6
    %v1192 = vperm.slane %v1047, 7
    %v1193 = vperm.slane %v1048, 0
    %v1194 = vperm.slane %v1048, 1
    %v1195 = vperm.slane %v1048, 2
    %v1196 = vperm.slane %v1048, 3
    %v1197 = vperm.slane %v1048, 4
    %v1198 = vperm.slane %v1048, 5
    %v1199 = vperm.slane %v1048, 6
    %v1200 = vperm.slane %v1048, 7
    %v1201 = vperm.slane %v1049, 0
    %v1202 = vperm.slane %v1049, 1
    %v1203 = vperm.slane %v1049, 2
    %v1204 = vperm.slane %v1049, 3
    %v1205 = vperm.slane %v1049, 4
    %v1206 = vperm.slane %v1049, 5
    %v1207 = vperm.slane %v1049, 6
    %v1208 = vperm.slane %v1049, 7
    %v1209 = vperm.slane %v1050, 0
    %v1210 = vperm.slane %v1050, 1
    %v1211 = vperm.slane %v1050, 2
    %v1212 = vperm.slane %v1050, 3
    %v1213 = vperm.slane %v1050, 4
    %v1214 = vperm.slane %v1050, 5
    %v1215 = vperm.slane %v1050, 6
    %v1216 = vperm.slane %v1050, 7
    %v1217 = vperm.slane %v1051, 0
    %v1218 = vperm.slane %v1051, 1
    %v1219 = vperm.slane %v1051, 2
    %v1220 = vperm.slane %v1051, 3
    %v1221 = vperm.slane %v1051, 4
    %v1222 = vperm.slane %v1051, 5
    %v1223 = vperm.slane %v1051, 6
    %v1224 = vperm.slane %v1051, 7
    %v1225 = vperm.slane %v1052, 0
    %v1226 = vperm.slane %v1052, 1
    %v1227 = vperm.slane %v1052, 2
    %v1228 = vperm.slane %v1052, 3
    %v1229 = vperm.slane %v1052, 4
    %v1230 = vperm.slane %v1052, 5
    %v1231 = vperm.slane %v1052, 6
    %v1232 = vperm.slane %v1052, 7
    %v1233 = vperm.slane %v1053, 0
    %v1234 = vperm.slane %v1053, 1
    %v1235 = vperm.slane %v1053, 2
    %v1236 = vperm.slane %v1053, 3
    %v1237 = vperm.slane %v1053, 4
    %v1238 = vperm.slane %v1053, 5
    %v1239 = vperm.slane %v1053, 6
    %v1240 = vperm.slane %v1053, 7
    %v1241 = vperm.slane %v1054, 0
    %v1242 = vperm.slane %v1054, 1
    %v1243 = vperm.slane %v1054, 2
    %v1244 = vperm.slane %v1054, 3
    %v1245 = vperm.slane %v1054, 4
    %v1246 = vperm.slane %v1054, 5
    %v1247 = vperm.slane %v1054, 6
    %v1248 = vperm.slane %v1054, 7
    %v1249 = vperm.slane %v1055, 0
    %v1250 = vperm.slane %v1055, 1
    %v1251 = vperm.slane %v1055, 2
    %v1252 = vperm.slane %v1055, 3
    %v1253 = vperm.slane %v1055, 4
    %v1254 = vperm.slane %v1055, 5
    %v1255 = vperm.slane %v1055, 6
    %v1256 = vperm.slane %v1055, 7
    %v1257 = vperm.slane %v1056, 0
    %v1258 = vperm.slane %v1056, 1
    %v1259 = vperm.slane %v1056, 2
    %v1260 = vperm.slane %v1056, 3
    %v1261 = vperm.slane %v1056, 4
    %v1262 = vperm.slane %v1056, 5
    %v1263 = vperm.slane %v1056, 6
    %v1264 = vperm.slane %v1056, 7
    %v1265 = vperm.slane %v1057, 0
    %v1266 = vperm.slane %v1057, 1
    %v1267 = vperm.slane %v1057, 2
    %v1268 = vperm.slane %v1057, 3
    %v1269 = vperm.slane %v1057, 4
    %v1270 = vperm.slane %v1057, 5
    %v1271 = vperm.slane %v1057, 6
    %v1272 = vperm.slane %v1057, 7
    %v1273 = vperm.slane %v1058, 0
    %v1274 = vperm.slane %v1058, 1
    %v1275 = vperm.slane %v1058, 2
    %v1276 = vperm.slane %v1058, 3
    %v1277 = vperm.slane %v1058, 4
    %v1278 = vperm.slane %v1058, 5
    %v1279 = vperm.slane %v1058, 6
    %v1280 = vperm.slane %v1058, 7
    %v1281 = vperm.slane %v1059, 0
    %v1282 = vperm.slane %v1059, 1
    %v1283 = vperm.slane %v1059, 2
    %v1284 = vperm.slane %v1059, 3
    %v1285 = vperm.slane %v1059, 4
    %v1286 = vperm.slane %v1059, 5
    %v1287 = vperm.slane %v1059, 6
    %v1288 = vperm.slane %v1059, 7
    %v1289 = vperm.slane %v1060, 0
    %v1290 = vperm.slane %v1060, 1
    %v1291 = vperm.slane %v1060, 2
    %v1292 = vperm.slane %v1060, 3
    %v1293 = vperm.slane %v1060, 4
    %v1294 = vperm.slane %v1060, 5
    %v1295 = vperm.slane %v1060, 6
    %v1296 = vperm.slane %v1060, 7
    %v1297 = vperm.slane %v1061, 0
    %v1298 = vperm.slane %v1061, 1
    %v1299 = vperm.slane %v1061, 2
    %v1300 = vperm.slane %v1061, 3
    %v1301 = vperm.slane %v1061, 4
    %v1302 = vperm.slane %v1061, 5
    %v1303 = vperm.slane %v1061, 6
    %v1304 = vperm.slane %v1061, 7
    %v1305 = vperm.slane %v1062, 0
    %v1306 = vperm.slane %v1062, 1
    %v1307 = vperm.slane %v1062, 2
    %v1308 = vperm.slane %v1062, 3
    %v1309 = vperm.slane %v1062, 4
    %v1310 = vperm.slane %v1062, 5
    %v1311 = vperm.slane %v1062, 6
    %v1312 = vperm.slane %v1062, 7
    %v1313 = vperm.slane %v1063, 0
    %v1314 = vperm.slane %v1063, 1
    %v1315 = vperm.slane %v1063, 2
    %v1316 = vperm.slane %v1063, 3
    %v1317 = vperm.slane %v1063, 4
    %v1318 = vperm.slane %v1063, 5
    %v1319 = vperm.slane %v1063, 6
    %v1320 = vperm.slane %v1063, 7
    %v1321 = vperm.slane %v1064, 0
    %v1322 = vperm.slane %v1064, 1
    %v1323 = vperm.slane %v1064, 2
    %v1324 = vperm.slane %v1064, 3
    %v1325 = vperm.slane %v1064, 4
    %v1326 = vperm.slane %v1064, 5
    %v1327 = vperm.slane %v1064, 6
    %v1328 = vperm.slane %v1064, 7
    %v1329 = vperm.slane %v1065, 0
    %v1330 = vperm.slane %v1065, 1
    %v1331 = vperm.slane %v1065, 2
    %v1332 = vperm.slane %v1065, 3
    %v1333 = vperm.slane %v1065, 4
    %v1334 = vperm.slane %v1065, 5
    %v1335 = vperm.slane %v1065, 6
    %v1336 = vperm.slane %v1065, 7
    %v1337 = vperm.slane %v1066, 0
    %v1338 = vperm.slane %v1066, 1
    %v1339 = vperm.slane %v1066, 2
    %v1340 = vperm.slane %v1066, 3
    %v1341 = vperm.slane %v1066, 4
    %v1342 = vperm.slane %v1066, 5
    %v1343 = vperm.slane %v1066, 6
    %v1344 = vperm.slane %v1066, 7
    %v1345 = vperm.slane %v1067, 0
    %v1346 = vperm.slane %v1067, 1
    %v1347 = vperm.slane %v1067, 2
    %v1348 = vperm.slane %v1067, 3
    %v1349 = vperm.slane %v1067, 4
    %v1350 = vperm.slane %v1067, 5
    %v1351 = vperm.slane %v1067, 6
    %v1352 = vperm.slane %v1067, 7
    %v1353 = vperm.slane %v1068, 0
    %v1354 = vperm.slane %v1068, 1
    %v1355 = vperm.slane %v1068, 2
    %v1356 = vperm.slane %v1068, 3
    %v1357 = vperm.slane %v1068, 4
    %v1358 = vperm.slane %v1068, 5
    %v1359 = vperm.slane %v1068, 6
    %v1360 = vperm.slane %v1068, 7
    %v1361 = vperm.slane %v1069, 0
    %v1362 = vperm.slane %v1069, 1
    %v1363 = vperm.slane %v1069, 2
    %v1364 = vperm.slane %v1069, 3
    %v1365 = vperm.slane %v1069, 4
    %v1366 = vperm.slane %v1069, 5
    %v1367 = vperm.slane %v1069, 6
    %v1368 = vperm.slane %v1069, 7
    %v1369 = vperm.slane %v1070, 0
    %v1370 = vperm.slane %v1070, 1
    %v1371 = vperm.slane %v1070, 2
    %v1372 = vperm.slane %v1070, 3
    %v1373 = vperm.slane %v1070, 4
    %v1374 = vperm.slane %v1070, 5
    %v1375 = vperm.slane %v1070, 6
    %v1376 = vperm.slane %v1070, 7
    %v1377 = vperm.slane %v1071, 0
    %v1378 = vperm.slane %v1071, 1
    %v1379 = vperm.slane %v1071, 2
    %v1380 = vperm.slane %v1071, 3
    %v1381 = vperm.slane %v1071, 4
    %v1382 = vperm.slane %v1071, 5
    %v1383 = vperm.slane %v1071, 6
    %v1384 = vperm.slane %v1071, 7
    %v1385 = vperm.slane %v1072, 0
    %v1386 = vperm.slane %v1072, 1
    %v1387 = vperm.slane %v1072, 2
    %v1388 = vperm.slane %v1072, 3
    %v1389 = vperm.slane %v1072, 4
    %v1390 = vperm.slane %v1072, 5
    %v1391 = vperm.slane %v1072, 6
    %v1392 = vperm.slane %v1072, 7
    %v1393 = vperm.slane %v1073, 0
    %v1394 = vperm.slane %v1073, 1
    %v1395 = vperm.slane %v1073, 2
    %v1396 = vperm.slane %v1073, 3
    %v1397 = vperm.slane %v1073, 4
    %v1398 = vperm.slane %v1073, 5
    %v1399 = vperm.slane %v1073, 6
    %v1400 = vperm.slane %v1073, 7
    %v1401 = vperm.slane %v1074, 0
    %v1402 = vperm.slane %v1074, 1
    %v1403 = vperm.slane %v1074, 2
    %v1404 = vperm.slane %v1074, 3
    %v1405 = vperm.slane %v1074, 4
    %v1406 = vperm.slane %v1074, 5
    %v1407 = vperm.slane %v1074, 6
    %v1408 = vperm.slane %v1074, 7
    %v1409 = vperm.slane %v1075, 0
    %v1410 = vperm.slane %v1075, 1
    %v1411 = vperm.slane %v1075, 2
    %v1412 = vperm.slane %v1075, 3
    %v1413 = vperm.slane %v1075, 4
    %v1414 = vperm.slane %v1075, 5
    %v1415 = vperm.slane %v1075, 6
    %v1416 = vperm.slane %v1075, 7
    %v1417 = vperm.slane %v1076, 0
    %v1418 = vperm.slane %v1076, 1
    %v1419 = vperm.slane %v1076, 2
    %v1420 = vperm.slane %v1076, 3
    %v1421 = vperm.slane %v1076, 4
    %v1422 = vperm.slane %v1076, 5
    %v1423 = vperm.slane %v1076, 6
    %v1424 = vperm.slane %v1076, 7
    %v1425 = vperm.slane %v1077, 0
    %v1426 = vperm.slane %v1077, 1
    %v1427 = vperm.slane %v1077, 2
    %v1428 = vperm.slane %v1077, 3
    %v1429 = vperm.slane %v1077, 4
    %v1430 = vperm.slane %v1077, 5
    %v1431 = vperm.slane %v1077, 6
    %v1432 = vperm.slane %v1077, 7
    %v1433 = vperm.slane %v1078, 0
    %v1434 = vperm.slane %v1078, 1
    %v1435 = vperm.slane %v1078, 2
    %v1436 = vperm.slane %v1078, 3
    %v1437 = vperm.slane %v1078, 4
    %v1438 = vperm.slane %v1078, 5
    %v1439 = vperm.slane %v1078, 6
    %v1440 = vperm.slane %v1078, 7
    %v1441 = vperm.slane %v1079, 0
    %v1442 = vperm.slane %v1079, 1
    %v1443 = vperm.slane %v1079, 2
    %v1444 = vperm.slane %v1079, 3
    %v1445 = vperm.slane %v1079, 4
    %v1446 = vperm.slane %v1079, 5
    %v1447 = vperm.slane %v1079, 6
    %v1448 = vperm.slane %v1079, 7
    %v1449 = vperm.slane %v1080, 0
    %v1450 = vperm.slane %v1080, 1
    %v1451 = vperm.slane %v1080, 2
    %v1452 = vperm.slane %v1080, 3
    %v1453 = vperm.slane %v1080, 4
    %v1454 = vperm.slane %v1080, 5
    %v1455 = vperm.slane %v1080, 6
    %v1456 = vperm.slane %v1080, 7
    %v1457 = vperm.slane %v1081, 0
    %v1458 = vperm.slane %v1081, 1
    %v1459 = vperm.slane %v1081, 2
    %v1460 = vperm.slane %v1081, 3
    %v1461 = vperm.slane %v1081, 4
    %v1462 = vperm.slane %v1081, 5
    %v1463 = vperm.slane %v1081, 6
    %v1464 = vperm.slane %v1081, 7
    %v1465 = vperm.slane %v1082, 0
    %v1466 = vperm.slane %v1082, 1
    %v1467 = vperm.slane %v1082, 2
    %v1468 = vperm.slane %v1082, 3
    %v1469 = vperm.slane %v1082, 4
    %v1470 = vperm.slane %v1082, 5
    %v1471 = vperm.slane %v1082, 6
    %v1472 = vperm.slane %v1082, 7
    %v1473 = vperm.slane %v1083, 0
    %v1474 = vperm.slane %v1083, 1
    %v1475 = vperm.slane %v1083, 2
    %v1476 = vperm.slane %v1083, 3
    %v1477 = vperm.slane %v1083, 4
    %v1478 = vperm.slane %v1083, 5
    %v1479 = vperm.slane %v1083, 6
    %v1480 = vperm.slane %v1083, 7
    %v1481 = vperm.slane %v1084, 0
    %v1482 = vperm.slane %v1084, 1
    %v1483 = vperm.slane %v1084, 2
    %v1484 = vperm.slane %v1084, 3
    %v1485 = vperm.slane %v1084, 4
    %v1486 = vperm.slane %v1084, 5
    %v1487 = vperm.slane %v1084, 6
    %v1488 = vperm.slane %v1084, 7
    %v1489 = vperm.slane %v1085, 0
    %v1490 = vperm.slane %v1085, 1
    %v1491 = vperm.slane %v1085, 2
    %v1492 = vperm.slane %v1085, 3
    %v1493 = vperm.slane %v1085, 4
    %v1494 = vperm.slane %v1085, 5
    %v1495 = vperm.slane %v1085, 6
    %v1496 = vperm.slane %v1085, 7
    %v1497 = vperm.slane %v1086, 0
    %v1498 = vperm.slane %v1086, 1
    %v1499 = vperm.slane %v1086, 2
    %v1500 = vperm.slane %v1086, 3
    %v1501 = vperm.slane %v1086, 4
    %v1502 = vperm.slane %v1086, 5
    %v1503 = vperm.slane %v1086, 6
    %v1504 = vperm.slane %v1086, 7
    %v1505 = vperm.slane %v1087, 0
    %v1506 = vperm.slane %v1087, 1
    %v1507 = vperm.slane %v1087, 2
    %v1508 = vperm.slane %v1087, 3
    %v1509 = vperm.slane %v1087, 4
    %v1510 = vperm.slane %v1087, 5
    %v1511 = vperm.slane %v1087, 6
    %v1512 = vperm.slane %v1087, 7
    %v1513 = vperm.slane %v1088, 0
    %v1514 = vperm.slane %v1088, 1
    %v1515 = vperm.slane %v1088, 2
    %v1516 = vperm.slane %v1088, 3
    %v1517 = vperm.slane %v1088, 4
    %v1518 = vperm.slane %v1088, 5
    %v1519 = vperm.slane %v1088, 6
    %v1520 = vperm.slane %v1088, 7
    %1521 = vst [vmem:[#allocation1] ss:$9 sm:$0xff] %v1137
    %s1522 = scalar_lea.vmem [#allocation1], 1
    %1523 = vst [vmem:[%s1522] ss:$9 sm:$0xff] %v1138
    %s1524 = scalar_lea.vmem [#allocation1], 2
    %1525 = vst [vmem:[%s1524] ss:$9 sm:$0xff] %v1139
    %s1526 = scalar_lea.vmem [#allocation1], 3
    %1527 = vst [vmem:[%s1526] ss:$9 sm:$0xff] %v1140
    %s1528 = scalar_lea.vmem [#allocation1], 4
    %1529 = vst [vmem:[%s1528] ss:$9 sm:$0xff] %v1141
    %s1530 = scalar_lea.vmem [#allocation1], 5
    %1531 = vst [vmem:[%s1530] ss:$9 sm:$0xff] %v1142
    %s1532 = scalar_lea.vmem [#allocation1], 6
    %1533 = vst [vmem:[%s1532] ss:$9 sm:$0xff] %v1143
    %s1534 = scalar_lea.vmem [#allocation1], 7
    %1535 = vst [vmem:[%s1534] ss:$9 sm:$0xff] %v1144
    %v1536 = vld [vmem:[#allocation1] sm:$0xff]
    %1537 = vst [vmem:[#allocation1] ss:$9 sm:$0xff] %v1145
    %1538 = vst [vmem:[%s1522] ss:$9 sm:$0xff] %v1146
    %1539 = vst [vmem:[%s1524] ss:$9 sm:$0xff] %v1147
    %1540 = vst [vmem:[%s1526] ss:$9 sm:$0xff] %v1148
    %1541 = vst [vmem:[%s1528] ss:$9 sm:$0xff] %v1149
    %1542 = vst [vmem:[%s1530] ss:$9 sm:$0xff] %v1150
    %1543 = vst [vmem:[%s1532] ss:$9 sm:$0xff] %v1151
    %1544 = vst [vmem:[%s1534] ss:$9 sm:$0xff] %v1152
    %v1545 = vld [vmem:[#allocation1] sm:$0xff]
    %1546 = vst [vmem:[#allocation1] ss:$9 sm:$0xff] %v1153
    %1547 = vst [vmem:[%s1522] ss:$9 sm:$0xff] %v1154
    %1548 = vst [vmem:[%s1524] ss:$9 sm:$0xff] %v1155
    %1549 = vst [vmem:[%s1526] ss:$9 sm:$0xff] %v1156
    %1550 = vst [vmem:[%s1528] ss:$9 sm:$0xff] %v1157
    %1551 = vst [vmem:[%s1530] ss:$9 sm:$0xff] %v1158
    %1552 = vst [vmem:[%s1532] ss:$9 sm:$0xff] %v1159
    %1553 = vst [vmem:[%s1534] ss:$9 sm:$0xff] %v1160
    %v1554 = vld [vmem:[#allocation1] sm:$0xff]
    %1555 = vst [vmem:[#allocation1] ss:$9 sm:$0xff] %v1161
    %1556 = vst [vmem:[%s1522] ss:$9 sm:$0xff] %v1162
    %1557 = vst [vmem:[%s1524] ss:$9 sm:$0xff] %v1163
    %1558 = vst [vmem:[%s1526] ss:$9 sm:$0xff] %v1164
    %1559 = vst [vmem:[%s1528] ss:$9 sm:$0xff] %v1165
    %1560 = vst [vmem:[%s1530] ss:$9 sm:$0xff] %v1166
    %1561 = vst [vmem:[%s1532] ss:$9 sm:$0xff] %v1167
    %1562 = vst [vmem:[%s1534] ss:$9 sm:$0xff] %v1168
    %v1563 = vld [vmem:[#allocation1] sm:$0xff]
    %1564 = vst [vmem:[#allocation1] ss:$9 sm:$0xff] %v1169
    %1565 = vst [vmem:[%s1522] ss:$9 sm:$0xff] %v1170
    %1566 = vst [vmem:[%s1524] ss:$9 sm:$0xff] %v1171
    %1567 = vst [vmem:[%s1526] ss:$9 sm:$0xff] %v1172
    %1568 = vst [vmem:[%s1528] ss:$9 sm:$0xff] %v1173
    %1569 = vst [vmem:[%s1530] ss:$9 sm:$0xff] %v1174
    %1570 = vst [vmem:[%s1532] ss:$9 sm:$0xff] %v1175
    %1571 = vst [vmem:[%s1534] ss:$9 sm:$0xff] %v1176
    %v1572 = vld [vmem:[#allocation1] sm:$0xff]
    %1573 = vst [vmem:[#allocation1] ss:$9 sm:$0xff] %v1177
    %1574 = vst [vmem:[%s1522] ss:$9 sm:$0xff] %v1178
    %1575 = vst [vmem:[%s1524] ss:$9 sm:$0xff] %v1179
    %1576 = vst [vmem:[%s1526] ss:$9 sm:$0xff] %v1180
    %1577 = vst [vmem:[%s1528] ss:$9 sm:$0xff] %v1181
    %1578 = vst [vmem:[%s1530] ss:$9 sm:$0xff] %v1182
    %1579 = vst [vmem:[%s1532] ss:$9 sm:$0xff] %v1183
    %1580 = vst [vmem:[%s1534] ss:$9 sm:$0xff] %v1184
    %v1581 = vld [vmem:[#allocation1] sm:$0xff]
    %1582 = vst [vmem:[#allocation1] ss:$9 sm:$0xff] %v1185
    %1583 = vst [vmem:[%s1522] ss:$9 sm:$0xff] %v1186
    %1584 = vst [vmem:[%s1524] ss:$9 sm:$0xff] %v1187
    %1585 = vst [vmem:[%s1526] ss:$9 sm:$0xff] %v1188
    %1586 = vst [vmem:[%s1528] ss:$9 sm:$0xff] %v1189
    %1587 = vst [vmem:[%s1530] ss:$9 sm:$0xff] %v1190
    %1588 = vst [vmem:[%s1532] ss:$9 sm:$0xff] %v1191
    %1589 = vst [vmem:[%s1534] ss:$9 sm:$0xff] %v1192
    %v1590 = vld [vmem:[#allocation1] sm:$0xff]
    %1591 = vst [vmem:[#allocation1] ss:$9 sm:$0xff] %v1193
    %1592 = vst [vmem:[%s1522] ss:$9 sm:$0xff] %v1194
    %1593 = vst [vmem:[%s1524] ss:$9 sm:$0xff] %v1195
    %1594 = vst [vmem:[%s1526] ss:$9 sm:$0xff] %v1196
    %1595 = vst [vmem:[%s1528] ss:$9 sm:$0xff] %v1197
    %1596 = vst [vmem:[%s1530] ss:$9 sm:$0xff] %v1198
    %1597 = vst [vmem:[%s1532] ss:$9 sm:$0xff] %v1199
    %1598 = vst [vmem:[%s1534] ss:$9 sm:$0xff] %v1200
    %v1599 = vld [vmem:[#allocation1] sm:$0xff]
    %1600 = vst [vmem:[#allocation1] ss:$9 sm:$0xff] %v1201
    %1601 = vst [vmem:[%s1522] ss:$9 sm:$0xff] %v1202
    %1602 = vst [vmem:[%s1524] ss:$9 sm:$0xff] %v1203
    %1603 = vst [vmem:[%s1526] ss:$9 sm:$0xff] %v1204
    %1604 = vst [vmem:[%s1528] ss:$9 sm:$0xff] %v1205
    %1605 = vst [vmem:[%s1530] ss:$9 sm:$0xff] %v1206
    %1606 = vst [vmem:[%s1532] ss:$9 sm:$0xff] %v1207
    %1607 = vst [vmem:[%s1534] ss:$9 sm:$0xff] %v1208
    %v1608 = vld [vmem:[#allocation1] sm:$0xff]
    %1609 = vst [vmem:[#allocation1] ss:$9 sm:$0xff] %v1209
    %1610 = vst [vmem:[%s1522] ss:$9 sm:$0xff] %v1210
    %1611 = vst [vmem:[%s1524] ss:$9 sm:$0xff] %v1211
    %1612 = vst [vmem:[%s1526] ss:$9 sm:$0xff] %v1212
    %1613 = vst [vmem:[%s1528] ss:$9 sm:$0xff] %v1213
    %1614 = vst [vmem:[%s1530] ss:$9 sm:$0xff] %v1214
    %1615 = vst [vmem:[%s1532] ss:$9 sm:$0xff] %v1215
    %1616 = vst [vmem:[%s1534] ss:$9 sm:$0xff] %v1216
    %v1617 = vld [vmem:[#allocation1] sm:$0xff]
    %1618 = vst [vmem:[#allocation1] ss:$9 sm:$0xff] %v1217
    %1619 = vst [vmem:[%s1522] ss:$9 sm:$0xff] %v1218
    %1620 = vst [vmem:[%s1524] ss:$9 sm:$0xff] %v1219
    %1621 = vst [vmem:[%s1526] ss:$9 sm:$0xff] %v1220
    %1622 = vst [vmem:[%s1528] ss:$9 sm:$0xff] %v1221
    %1623 = vst [vmem:[%s1530] ss:$9 sm:$0xff] %v1222
    %1624 = vst [vmem:[%s1532] ss:$9 sm:$0xff] %v1223
    %1625 = vst [vmem:[%s1534] ss:$9 sm:$0xff] %v1224
    %v1626 = vld [vmem:[#allocation1] sm:$0xff]
    %1627 = vst [vmem:[#allocation1] ss:$9 sm:$0xff] %v1225
    %1628 = vst [vmem:[%s1522] ss:$9 sm:$0xff] %v1226
    %1629 = vst [vmem:[%s1524] ss:$9 sm:$0xff] %v1227
    %1630 = vst [vmem:[%s1526] ss:$9 sm:$0xff] %v1228
    %1631 = vst [vmem:[%s1528] ss:$9 sm:$0xff] %v1229
    %1632 = vst [vmem:[%s1530] ss:$9 sm:$0xff] %v1230
    %1633 = vst [vmem:[%s1532] ss:$9 sm:$0xff] %v1231
    %1634 = vst [vmem:[%s1534] ss:$9 sm:$0xff] %v1232
    %v1635 = vld [vmem:[#allocation1] sm:$0xff]
    %1636 = vst [vmem:[#allocation1] ss:$9 sm:$0xff] %v1233
    %1637 = vst [vmem:[%s1522] ss:$9 sm:$0xff] %v1234
    %1638 = vst [vmem:[%s1524] ss:$9 sm:$0xff] %v1235
    %1639 = vst [vmem:[%s1526] ss:$9 sm:$0xff] %v1236
    %1640 = vst [vmem:[%s1528] ss:$9 sm:$0xff] %v1237
    %1641 = vst [vmem:[%s1530] ss:$9 sm:$0xff] %v1238
    %1642 = vst [vmem:[%s1532] ss:$9 sm:$0xff] %v1239
    %1643 = vst [vmem:[%s1534] ss:$9 sm:$0xff] %v1240
    %v1644 = vld [vmem:[#allocation1] sm:$0xff]
    %1645 = vst [vmem:[#allocation1] ss:$9 sm:$0xff] %v1241
    %1646 = vst [vmem:[%s1522] ss:$9 sm:$0xff] %v1242
    %1647 = vst [vmem:[%s1524] ss:$9 sm:$0xff] %v1243
    %1648 = vst [vmem:[%s1526] ss:$9 sm:$0xff] %v1244
    %1649 = vst [vmem:[%s1528] ss:$9 sm:$0xff] %v1245
    %1650 = vst [vmem:[%s1530] ss:$9 sm:$0xff] %v1246
    %1651 = vst [vmem:[%s1532] ss:$9 sm:$0xff] %v1247
    %1652 = vst [vmem:[%s1534] ss:$9 sm:$0xff] %v1248
    %v1653 = vld [vmem:[#allocation1] sm:$0xff]
    %1654 = vst [vmem:[#allocation1] ss:$9 sm:$0xff] %v1249
    %1655 = vst [vmem:[%s1522] ss:$9 sm:$0xff] %v1250
    %1656 = vst [vmem:[%s1524] ss:$9 sm:$0xff] %v1251
    %1657 = vst [vmem:[%s1526] ss:$9 sm:$0xff] %v1252
    %1658 = vst [vmem:[%s1528] ss:$9 sm:$0xff] %v1253
    %1659 = vst [vmem:[%s1530] ss:$9 sm:$0xff] %v1254
    %1660 = vst [vmem:[%s1532] ss:$9 sm:$0xff] %v1255
    %1661 = vst [vmem:[%s1534] ss:$9 sm:$0xff] %v1256
    %v1662 = vld [vmem:[#allocation1] sm:$0xff]
    %1663 = vst [vmem:[#allocation1] ss:$9 sm:$0xff] %v1257
    %1664 = vst [vmem:[%s1522] ss:$9 sm:$0xff] %v1258
    %1665 = vst [vmem:[%s1524] ss:$9 sm:$0xff] %v1259
    %1666 = vst [vmem:[%s1526] ss:$9 sm:$0xff] %v1260
    %1667 = vst [vmem:[%s1528] ss:$9 sm:$0xff] %v1261
    %1668 = vst [vmem:[%s1530] ss:$9 sm:$0xff] %v1262
    %1669 = vst [vmem:[%s1532] ss:$9 sm:$0xff] %v1263
    %1670 = vst [vmem:[%s1534] ss:$9 sm:$0xff] %v1264
    %v1671 = vld [vmem:[#allocation1] sm:$0xff]
    %1672 = vst [vmem:[#allocation1] ss:$9 sm:$0xff] %v1265
    %1673 = vst [vmem:[%s1522] ss:$9 sm:$0xff] %v1266
    %1674 = vst [vmem:[%s1524] ss:$9 sm:$0xff] %v1267
    %1675 = vst [vmem:[%s1526] ss:$9 sm:$0xff] %v1268
    %1676 = vst [vmem:[%s1528] ss:$9 sm:$0xff] %v1269
    %1677 = vst [vmem:[%s1530] ss:$9 sm:$0xff] %v1270
    %1678 = vst [vmem:[%s1532] ss:$9 sm:$0xff] %v1271
    %1679 = vst [vmem:[%s1534] ss:$9 sm:$0xff] %v1272
    %v1680 = vld [vmem:[#allocation1] sm:$0xff]
    %1681 = vst [vmem:[#allocation1] ss:$9 sm:$0xff] %v1273
    %1682 = vst [vmem:[%s1522] ss:$9 sm:$0xff] %v1274
    %1683 = vst [vmem:[%s1524] ss:$9 sm:$0xff] %v1275
    %1684 = vst [vmem:[%s1526] ss:$9 sm:$0xff] %v1276
    %1685 = vst [vmem:[%s1528] ss:$9 sm:$0xff] %v1277
    %1686 = vst [vmem:[%s1530] ss:$9 sm:$0xff] %v1278
    %1687 = vst [vmem:[%s1532] ss:$9 sm:$0xff] %v1279
    %1688 = vst [vmem:[%s1534] ss:$9 sm:$0xff] %v1280
    %v1689 = vld [vmem:[#allocation1] sm:$0xff]
    %1690 = vst [vmem:[#allocation1] ss:$9 sm:$0xff] %v1281
    %1691 = vst [vmem:[%s1522] ss:$9 sm:$0xff] %v1282
    %1692 = vst [vmem:[%s1524] ss:$9 sm:$0xff] %v1283
    %1693 = vst [vmem:[%s1526] ss:$9 sm:$0xff] %v1284
    %1694 = vst [vmem:[%s1528] ss:$9 sm:$0xff] %v1285
    %1695 = vst [vmem:[%s1530] ss:$9 sm:$0xff] %v1286
    %1696 = vst [vmem:[%s1532] ss:$9 sm:$0xff] %v1287
    %1697 = vst [vmem:[%s1534] ss:$9 sm:$0xff] %v1288
    %v1698 = vld [vmem:[#allocation1] sm:$0xff]
    %1699 = vst [vmem:[#allocation1] ss:$9 sm:$0xff] %v1289
    %1700 = vst [vmem:[%s1522] ss:$9 sm:$0xff] %v1290
    %1701 = vst [vmem:[%s1524] ss:$9 sm:$0xff] %v1291
    %1702 = vst [vmem:[%s1526] ss:$9 sm:$0xff] %v1292
    %1703 = vst [vmem:[%s1528] ss:$9 sm:$0xff] %v1293
    %1704 = vst [vmem:[%s1530] ss:$9 sm:$0xff] %v1294
    %1705 = vst [vmem:[%s1532] ss:$9 sm:$0xff] %v1295
    %1706 = vst [vmem:[%s1534] ss:$9 sm:$0xff] %v1296
    %v1707 = vld [vmem:[#allocation1] sm:$0xff]
    %1708 = vst [vmem:[#allocation1] ss:$9 sm:$0xff] %v1297
    %1709 = vst [vmem:[%s1522] ss:$9 sm:$0xff] %v1298
    %1710 = vst [vmem:[%s1524] ss:$9 sm:$0xff] %v1299
    %1711 = vst [vmem:[%s1526] ss:$9 sm:$0xff] %v1300
    %1712 = vst [vmem:[%s1528] ss:$9 sm:$0xff] %v1301
    %1713 = vst [vmem:[%s1530] ss:$9 sm:$0xff] %v1302
    %1714 = vst [vmem:[%s1532] ss:$9 sm:$0xff] %v1303
    %1715 = vst [vmem:[%s1534] ss:$9 sm:$0xff] %v1304
    %v1716 = vld [vmem:[#allocation1] sm:$0xff]
    %1717 = vst [vmem:[#allocation1] ss:$9 sm:$0xff] %v1305
    %1718 = vst [vmem:[%s1522] ss:$9 sm:$0xff] %v1306
    %1719 = vst [vmem:[%s1524] ss:$9 sm:$0xff] %v1307
    %1720 = vst [vmem:[%s1526] ss:$9 sm:$0xff] %v1308
    %1721 = vst [vmem:[%s1528] ss:$9 sm:$0xff] %v1309
    %1722 = vst [vmem:[%s1530] ss:$9 sm:$0xff] %v1310
    %1723 = vst [vmem:[%s1532] ss:$9 sm:$0xff] %v1311
    %1724 = vst [vmem:[%s1534] ss:$9 sm:$0xff] %v1312
    %v1725 = vld [vmem:[#allocation1] sm:$0xff]
    %1726 = vst [vmem:[#allocation1] ss:$9 sm:$0xff] %v1313
    %1727 = vst [vmem:[%s1522] ss:$9 sm:$0xff] %v1314
    %1728 = vst [vmem:[%s1524] ss:$9 sm:$0xff] %v1315
    %1729 = vst [vmem:[%s1526] ss:$9 sm:$0xff] %v1316
    %1730 = vst [vmem:[%s1528] ss:$9 sm:$0xff] %v1317
    %1731 = vst [vmem:[%s1530] ss:$9 sm:$0xff] %v1318
    %1732 = vst [vmem:[%s1532] ss:$9 sm:$0xff] %v1319
    %1733 = vst [vmem:[%s1534] ss:$9 sm:$0xff] %v1320
    %v1734 = vld [vmem:[#allocation1] sm:$0xff]
    %1735 = vst [vmem:[#allocation1] ss:$9 sm:$0xff] %v1321
    %1736 = vst [vmem:[%s1522] ss:$9 sm:$0xff] %v1322
    %1737 = vst [vmem:[%s1524] ss:$9 sm:$0xff] %v1323
    %1738 = vst [vmem:[%s1526] ss:$9 sm:$0xff] %v1324
    %1739 = vst [vmem:[%s1528] ss:$9 sm:$0xff] %v1325
    %1740 = vst [vmem:[%s1530] ss:$9 sm:$0xff] %v1326
    %1741 = vst [vmem:[%s1532] ss:$9 sm:$0xff] %v1327
    %1742 = vst [vmem:[%s1534] ss:$9 sm:$0xff] %v1328
    %v1743 = vld [vmem:[#allocation1] sm:$0xff]
    %1744 = vst [vmem:[#allocation1] ss:$9 sm:$0xff] %v1329
    %1745 = vst [vmem:[%s1522] ss:$9 sm:$0xff] %v1330
    %1746 = vst [vmem:[%s1524] ss:$9 sm:$0xff] %v1331
    %1747 = vst [vmem:[%s1526] ss:$9 sm:$0xff] %v1332
    %1748 = vst [vmem:[%s1528] ss:$9 sm:$0xff] %v1333
    %1749 = vst [vmem:[%s1530] ss:$9 sm:$0xff] %v1334
    %1750 = vst [vmem:[%s1532] ss:$9 sm:$0xff] %v1335
    %1751 = vst [vmem:[%s1534] ss:$9 sm:$0xff] %v1336
    %v1752 = vld [vmem:[#allocation1] sm:$0xff]
    %1753 = vst [vmem:[#allocation1] ss:$9 sm:$0xff] %v1337
    %1754 = vst [vmem:[%s1522] ss:$9 sm:$0xff] %v1338
    %1755 = vst [vmem:[%s1524] ss:$9 sm:$0xff] %v1339
    %1756 = vst [vmem:[%s1526] ss:$9 sm:$0xff] %v1340
    %1757 = vst [vmem:[%s1528] ss:$9 sm:$0xff] %v1341
    %1758 = vst [vmem:[%s1530] ss:$9 sm:$0xff] %v1342
    %1759 = vst [vmem:[%s1532] ss:$9 sm:$0xff] %v1343
    %1760 = vst [vmem:[%s1534] ss:$9 sm:$0xff] %v1344
    %v1761 = vld [vmem:[#allocation1] sm:$0xff]
    %1762 = vst [vmem:[#allocation1] ss:$9 sm:$0xff] %v1345
    %1763 = vst [vmem:[%s1522] ss:$9 sm:$0xff] %v1346
    %1764 = vst [vmem:[%s1524] ss:$9 sm:$0xff] %v1347
    %1765 = vst [vmem:[%s1526] ss:$9 sm:$0xff] %v1348
    %1766 = vst [vmem:[%s1528] ss:$9 sm:$0xff] %v1349
    %1767 = vst [vmem:[%s1530] ss:$9 sm:$0xff] %v1350
    %1768 = vst [vmem:[%s1532] ss:$9 sm:$0xff] %v1351
    %1769 = vst [vmem:[%s1534] ss:$9 sm:$0xff] %v1352
    %v1770 = vld [vmem:[#allocation1] sm:$0xff]
    %1771 = vst [vmem:[#allocation1] ss:$9 sm:$0xff] %v1353
    %1772 = vst [vmem:[%s1522] ss:$9 sm:$0xff] %v1354
    %1773 = vst [vmem:[%s1524] ss:$9 sm:$0xff] %v1355
    %1774 = vst [vmem:[%s1526] ss:$9 sm:$0xff] %v1356
    %1775 = vst [vmem:[%s1528] ss:$9 sm:$0xff] %v1357
    %1776 = vst [vmem:[%s1530] ss:$9 sm:$0xff] %v1358
    %1777 = vst [vmem:[%s1532] ss:$9 sm:$0xff] %v1359
    %1778 = vst [vmem:[%s1534] ss:$9 sm:$0xff] %v1360
    %v1779 = vld [vmem:[#allocation1] sm:$0xff]
    %1780 = vst [vmem:[#allocation1] ss:$9 sm:$0xff] %v1361
    %1781 = vst [vmem:[%s1522] ss:$9 sm:$0xff] %v1362
    %1782 = vst [vmem:[%s1524] ss:$9 sm:$0xff] %v1363
    %1783 = vst [vmem:[%s1526] ss:$9 sm:$0xff] %v1364
    %1784 = vst [vmem:[%s1528] ss:$9 sm:$0xff] %v1365
    %1785 = vst [vmem:[%s1530] ss:$9 sm:$0xff] %v1366
    %1786 = vst [vmem:[%s1532] ss:$9 sm:$0xff] %v1367
    %1787 = vst [vmem:[%s1534] ss:$9 sm:$0xff] %v1368
    %v1788 = vld [vmem:[#allocation1] sm:$0xff]
    %1789 = vst [vmem:[#allocation1] ss:$9 sm:$0xff] %v1369
    %1790 = vst [vmem:[%s1522] ss:$9 sm:$0xff] %v1370
    %1791 = vst [vmem:[%s1524] ss:$9 sm:$0xff] %v1371
    %1792 = vst [vmem:[%s1526] ss:$9 sm:$0xff] %v1372
    %1793 = vst [vmem:[%s1528] ss:$9 sm:$0xff] %v1373
    %1794 = vst [vmem:[%s1530] ss:$9 sm:$0xff] %v1374
    %1795 = vst [vmem:[%s1532] ss:$9 sm:$0xff] %v1375
    %1796 = vst [vmem:[%s1534] ss:$9 sm:$0xff] %v1376
    %v1797 = vld [vmem:[#allocation1] sm:$0xff]
    %1798 = vst [vmem:[#allocation1] ss:$9 sm:$0xff] %v1377
    %1799 = vst [vmem:[%s1522] ss:$9 sm:$0xff] %v1378
    %1800 = vst [vmem:[%s1524] ss:$9 sm:$0xff] %v1379
    %1801 = vst [vmem:[%s1526] ss:$9 sm:$0xff] %v1380
    %1802 = vst [vmem:[%s1528] ss:$9 sm:$0xff] %v1381
    %1803 = vst [vmem:[%s1530] ss:$9 sm:$0xff] %v1382
    %1804 = vst [vmem:[%s1532] ss:$9 sm:$0xff] %v1383
    %1805 = vst [vmem:[%s1534] ss:$9 sm:$0xff] %v1384
    %v1806 = vld [vmem:[#allocation1] sm:$0xff]
    %1807 = vst [vmem:[#allocation1] ss:$9 sm:$0xff] %v1385
    %1808 = vst [vmem:[%s1522] ss:$9 sm:$0xff] %v1386
    %1809 = vst [vmem:[%s1524] ss:$9 sm:$0xff] %v1387
    %1810 = vst [vmem:[%s1526] ss:$9 sm:$0xff] %v1388
    %1811 = vst [vmem:[%s1528] ss:$9 sm:$0xff] %v1389
    %1812 = vst [vmem:[%s1530] ss:$9 sm:$0xff] %v1390
    %1813 = vst [vmem:[%s1532] ss:$9 sm:$0xff] %v1391
    %1814 = vst [vmem:[%s1534] ss:$9 sm:$0xff] %v1392
    %v1815 = vld [vmem:[#allocation1] sm:$0xff]
    %1816 = vst [vmem:[#allocation1] ss:$9 sm:$0xff] %v1393
    %1817 = vst [vmem:[%s1522] ss:$9 sm:$0xff] %v1394
    %1818 = vst [vmem:[%s1524] ss:$9 sm:$0xff] %v1395
    %1819 = vst [vmem:[%s1526] ss:$9 sm:$0xff] %v1396
    %1820 = vst [vmem:[%s1528] ss:$9 sm:$0xff] %v1397
    %1821 = vst [vmem:[%s1530] ss:$9 sm:$0xff] %v1398
    %1822 = vst [vmem:[%s1532] ss:$9 sm:$0xff] %v1399
    %1823 = vst [vmem:[%s1534] ss:$9 sm:$0xff] %v1400
    %v1824 = vld [vmem:[#allocation1] sm:$0xff]
    %1825 = vst [vmem:[#allocation1] ss:$9 sm:$0xff] %v1401
    %1826 = vst [vmem:[%s1522] ss:$9 sm:$0xff] %v1402
    %1827 = vst [vmem:[%s1524] ss:$9 sm:$0xff] %v1403
    %1828 = vst [vmem:[%s1526] ss:$9 sm:$0xff] %v1404
    %1829 = vst [vmem:[%s1528] ss:$9 sm:$0xff] %v1405
    %1830 = vst [vmem:[%s1530] ss:$9 sm:$0xff] %v1406
    %1831 = vst [vmem:[%s1532] ss:$9 sm:$0xff] %v1407
    %1832 = vst [vmem:[%s1534] ss:$9 sm:$0xff] %v1408
    %v1833 = vld [vmem:[#allocation1] sm:$0xff]
    %1834 = vst [vmem:[#allocation1] ss:$9 sm:$0xff] %v1409
    %1835 = vst [vmem:[%s1522] ss:$9 sm:$0xff] %v1410
    %1836 = vst [vmem:[%s1524] ss:$9 sm:$0xff] %v1411
    %1837 = vst [vmem:[%s1526] ss:$9 sm:$0xff] %v1412
    %1838 = vst [vmem:[%s1528] ss:$9 sm:$0xff] %v1413
    %1839 = vst [vmem:[%s1530] ss:$9 sm:$0xff] %v1414
    %1840 = vst [vmem:[%s1532] ss:$9 sm:$0xff] %v1415
    %1841 = vst [vmem:[%s1534] ss:$9 sm:$0xff] %v1416
    %v1842 = vld [vmem:[#allocation1] sm:$0xff]
    %1843 = vst [vmem:[#allocation1] ss:$9 sm:$0xff] %v1417
    %1844 = vst [vmem:[%s1522] ss:$9 sm:$0xff] %v1418
    %1845 = vst [vmem:[%s1524] ss:$9 sm:$0xff] %v1419
    %1846 = vst [vmem:[%s1526] ss:$9 sm:$0xff] %v1420
    %1847 = vst [vmem:[%s1528] ss:$9 sm:$0xff] %v1421
    %1848 = vst [vmem:[%s1530] ss:$9 sm:$0xff] %v1422
    %1849 = vst [vmem:[%s1532] ss:$9 sm:$0xff] %v1423
    %1850 = vst [vmem:[%s1534] ss:$9 sm:$0xff] %v1424
    %v1851 = vld [vmem:[#allocation1] sm:$0xff]
    %1852 = vst [vmem:[#allocation1] ss:$9 sm:$0xff] %v1425
    %1853 = vst [vmem:[%s1522] ss:$9 sm:$0xff] %v1426
    %1854 = vst [vmem:[%s1524] ss:$9 sm:$0xff] %v1427
    %1855 = vst [vmem:[%s1526] ss:$9 sm:$0xff] %v1428
    %1856 = vst [vmem:[%s1528] ss:$9 sm:$0xff] %v1429
    %1857 = vst [vmem:[%s1530] ss:$9 sm:$0xff] %v1430
    %1858 = vst [vmem:[%s1532] ss:$9 sm:$0xff] %v1431
    %1859 = vst [vmem:[%s1534] ss:$9 sm:$0xff] %v1432
    %v1860 = vld [vmem:[#allocation1] sm:$0xff]
    %1861 = vst [vmem:[#allocation1] ss:$9 sm:$0xff] %v1433
    %1862 = vst [vmem:[%s1522] ss:$9 sm:$0xff] %v1434
    %1863 = vst [vmem:[%s1524] ss:$9 sm:$0xff] %v1435
    %1864 = vst [vmem:[%s1526] ss:$9 sm:$0xff] %v1436
    %1865 = vst [vmem:[%s1528] ss:$9 sm:$0xff] %v1437
    %1866 = vst [vmem:[%s1530] ss:$9 sm:$0xff] %v1438
    %1867 = vst [vmem:[%s1532] ss:$9 sm:$0xff] %v1439
    %1868 = vst [vmem:[%s1534] ss:$9 sm:$0xff] %v1440
    %v1869 = vld [vmem:[#allocation1] sm:$0xff]
    %1870 = vst [vmem:[#allocation1] ss:$9 sm:$0xff] %v1441
    %1871 = vst [vmem:[%s1522] ss:$9 sm:$0xff] %v1442
    %1872 = vst [vmem:[%s1524] ss:$9 sm:$0xff] %v1443
    %1873 = vst [vmem:[%s1526] ss:$9 sm:$0xff] %v1444
    %1874 = vst [vmem:[%s1528] ss:$9 sm:$0xff] %v1445
    %1875 = vst [vmem:[%s1530] ss:$9 sm:$0xff] %v1446
    %1876 = vst [vmem:[%s1532] ss:$9 sm:$0xff] %v1447
    %1877 = vst [vmem:[%s1534] ss:$9 sm:$0xff] %v1448
    %v1878 = vld [vmem:[#allocation1] sm:$0xff]
    %1879 = vst [vmem:[#allocation1] ss:$9 sm:$0xff] %v1449
    %1880 = vst [vmem:[%s1522] ss:$9 sm:$0xff] %v1450
    %1881 = vst [vmem:[%s1524] ss:$9 sm:$0xff] %v1451
    %1882 = vst [vmem:[%s1526] ss:$9 sm:$0xff] %v1452
    %1883 = vst [vmem:[%s1528] ss:$9 sm:$0xff] %v1453
    %1884 = vst [vmem:[%s1530] ss:$9 sm:$0xff] %v1454
    %1885 = vst [vmem:[%s1532] ss:$9 sm:$0xff] %v1455
    %1886 = vst [vmem:[%s1534] ss:$9 sm:$0xff] %v1456
    %v1887 = vld [vmem:[#allocation1] sm:$0xff]
    %1888 = vst [vmem:[#allocation1] ss:$9 sm:$0xff] %v1457
    %1889 = vst [vmem:[%s1522] ss:$9 sm:$0xff] %v1458
    %1890 = vst [vmem:[%s1524] ss:$9 sm:$0xff] %v1459
    %1891 = vst [vmem:[%s1526] ss:$9 sm:$0xff] %v1460
    %1892 = vst [vmem:[%s1528] ss:$9 sm:$0xff] %v1461
    %1893 = vst [vmem:[%s1530] ss:$9 sm:$0xff] %v1462
    %1894 = vst [vmem:[%s1532] ss:$9 sm:$0xff] %v1463
    %1895 = vst [vmem:[%s1534] ss:$9 sm:$0xff] %v1464
    %v1896 = vld [vmem:[#allocation1] sm:$0xff]
    %1897 = vst [vmem:[#allocation1] ss:$9 sm:$0xff] %v1465
    %1898 = vst [vmem:[%s1522] ss:$9 sm:$0xff] %v1466
    %1899 = vst [vmem:[%s1524] ss:$9 sm:$0xff] %v1467
    %1900 = vst [vmem:[%s1526] ss:$9 sm:$0xff] %v1468
    %1901 = vst [vmem:[%s1528] ss:$9 sm:$0xff] %v1469
    %1902 = vst [vmem:[%s1530] ss:$9 sm:$0xff] %v1470
    %1903 = vst [vmem:[%s1532] ss:$9 sm:$0xff] %v1471
    %1904 = vst [vmem:[%s1534] ss:$9 sm:$0xff] %v1472
    %v1905 = vld [vmem:[#allocation1] sm:$0xff]
    %1906 = vst [vmem:[#allocation1] ss:$9 sm:$0xff] %v1473
    %1907 = vst [vmem:[%s1522] ss:$9 sm:$0xff] %v1474
    %1908 = vst [vmem:[%s1524] ss:$9 sm:$0xff] %v1475
    %1909 = vst [vmem:[%s1526] ss:$9 sm:$0xff] %v1476
    %1910 = vst [vmem:[%s1528] ss:$9 sm:$0xff] %v1477
    %1911 = vst [vmem:[%s1530] ss:$9 sm:$0xff] %v1478
    %1912 = vst [vmem:[%s1532] ss:$9 sm:$0xff] %v1479
    %1913 = vst [vmem:[%s1534] ss:$9 sm:$0xff] %v1480
    %v1914 = vld [vmem:[#allocation1] sm:$0xff]
    %1915 = vst [vmem:[#allocation1] ss:$9 sm:$0xff] %v1481
    %1916 = vst [vmem:[%s1522] ss:$9 sm:$0xff] %v1482
    %1917 = vst [vmem:[%s1524] ss:$9 sm:$0xff] %v1483
    %1918 = vst [vmem:[%s1526] ss:$9 sm:$0xff] %v1484
    %1919 = vst [vmem:[%s1528] ss:$9 sm:$0xff] %v1485
    %1920 = vst [vmem:[%s1530] ss:$9 sm:$0xff] %v1486
    %1921 = vst [vmem:[%s1532] ss:$9 sm:$0xff] %v1487
    %1922 = vst [vmem:[%s1534] ss:$9 sm:$0xff] %v1488
    %v1923 = vld [vmem:[#allocation1] sm:$0xff]
    %1924 = vst [vmem:[#allocation1] ss:$9 sm:$0xff] %v1489
    %1925 = vst [vmem:[%s1522] ss:$9 sm:$0xff] %v1490
    %1926 = vst [vmem:[%s1524] ss:$9 sm:$0xff] %v1491
    %1927 = vst [vmem:[%s1526] ss:$9 sm:$0xff] %v1492
    %1928 = vst [vmem:[%s1528] ss:$9 sm:$0xff] %v1493
    %1929 = vst [vmem:[%s1530] ss:$9 sm:$0xff] %v1494
    %1930 = vst [vmem:[%s1532] ss:$9 sm:$0xff] %v1495
    %1931 = vst [vmem:[%s1534] ss:$9 sm:$0xff] %v1496
    %v1932 = vld [vmem:[#allocation1] sm:$0xff]
    %1933 = vst [vmem:[#allocation1] ss:$9 sm:$0xff] %v1497
    %1934 = vst [vmem:[%s1522] ss:$9 sm:$0xff] %v1498
    %1935 = vst [vmem:[%s1524] ss:$9 sm:$0xff] %v1499
    %1936 = vst [vmem:[%s1526] ss:$9 sm:$0xff] %v1500
    %1937 = vst [vmem:[%s1528] ss:$9 sm:$0xff] %v1501
    %1938 = vst [vmem:[%s1530] ss:$9 sm:$0xff] %v1502
    %1939 = vst [vmem:[%s1532] ss:$9 sm:$0xff] %v1503
    %1940 = vst [vmem:[%s1534] ss:$9 sm:$0xff] %v1504
    %v1941 = vld [vmem:[#allocation1] sm:$0xff]
    %1942 = vst [vmem:[#allocation1] ss:$9 sm:$0xff] %v1505
    %1943 = vst [vmem:[%s1522] ss:$9 sm:$0xff] %v1506
    %1944 = vst [vmem:[%s1524] ss:$9 sm:$0xff] %v1507
    %1945 = vst [vmem:[%s1526] ss:$9 sm:$0xff] %v1508
    %1946 = vst [vmem:[%s1528] ss:$9 sm:$0xff] %v1509
    %1947 = vst [vmem:[%s1530] ss:$9 sm:$0xff] %v1510
    %1948 = vst [vmem:[%s1532] ss:$9 sm:$0xff] %v1511
    %1949 = vst [vmem:[%s1534] ss:$9 sm:$0xff] %v1512
    %v1950 = vld [vmem:[#allocation1] sm:$0xff]
    %1951 = vst [vmem:[#allocation1] ss:$9 sm:$0xff] %v1513
    %1952 = vst [vmem:[%s1522] ss:$9 sm:$0xff] %v1514
    %1953 = vst [vmem:[%s1524] ss:$9 sm:$0xff] %v1515
    %1954 = vst [vmem:[%s1526] ss:$9 sm:$0xff] %v1516
    %1955 = vst [vmem:[%s1528] ss:$9 sm:$0xff] %v1517
    %1956 = vst [vmem:[%s1530] ss:$9 sm:$0xff] %v1518
    %1957 = vst [vmem:[%s1532] ss:$9 sm:$0xff] %v1519
    %1958 = vst [vmem:[%s1534] ss:$9 sm:$0xff] %v1520
    %v1959 = vld [vmem:[#allocation1] sm:$0xff]
    %1960 = vset.pattern.permute.xlu0 0
    %1961 = vperm.xlu0 %1960, %v1536
    %v1962 = vpop.permute.xlu0 %1961
    %1963 = vset.pattern.permute.xlu0 0
    %1964 = vperm.xlu0 %1963, %v1545
    %v1965 = vpop.permute.xlu0 %1964
    %1966 = vset.pattern.permute.xlu0 0
    %1967 = vperm.xlu0 %1966, %v1554
    %v1968 = vpop.permute.xlu0 %1967
    %1969 = vset.pattern.permute.xlu0 0
    %1970 = vperm.xlu0 %1969, %v1563
    %v1971 = vpop.permute.xlu0 %1970
    %1972 = vset.pattern.permute.xlu0 0
    %1973 = vperm.xlu0 %1972, %v1572
    %v1974 = vpop.permute.xlu0 %1973
    %1975 = vset.pattern.permute.xlu0 0
    %1976 = vperm.xlu0 %1975, %v1581
    %v1977 = vpop.permute.xlu0 %1976
    %1978 = vset.pattern.permute.xlu0 0
    %1979 = vperm.xlu0 %1978, %v1590
    %v1980 = vpop.permute.xlu0 %1979
    %1981 = vset.pattern.permute.xlu0 0
    %1982 = vperm.xlu0 %1981, %v1599
    %v1983 = vpop.permute.xlu0 %1982
    %1984 = vset.pattern.permute.xlu0 0
    %1985 = vperm.xlu0 %1984, %v1608
    %v1986 = vpop.permute.xlu0 %1985
    %1987 = vset.pattern.permute.xlu0 0
    %1988 = vperm.xlu0 %1987, %v1617
    %v1989 = vpop.permute.xlu0 %1988
    %1990 = vset.pattern.permute.xlu0 0
    %1991 = vperm.xlu0 %1990, %v1626
    %v1992 = vpop.permute.xlu0 %1991
    %1993 = vset.pattern.permute.xlu0 0
    %1994 = vperm.xlu0 %1993, %v1635
    %v1995 = vpop.permute.xlu0 %1994
    %1996 = vset.pattern.permute.xlu0 0
    %1997 = vperm.xlu0 %1996, %v1644
    %v1998 = vpop.permute.xlu0 %1997
    %1999 = vset.pattern.permute.xlu0 0
    %2000 = vperm.xlu0 %1999, %v1653
    %v2001 = vpop.permute.xlu0 %2000
    %2002 = vset.pattern.permute.xlu0 0
    %2003 = vperm.xlu0 %2002, %v1662
    %v2004 = vpop.permute.xlu0 %2003
    %2005 = vset.pattern.permute.xlu0 0
    %2006 = vperm.xlu0 %2005, %v1671
    %v2007 = vpop.permute.xlu0 %2006
    %2008 = vset.pattern.permute.xlu0 0
    %2009 = vperm.xlu0 %2008, %v1680
    %v2010 = vpop.permute.xlu0 %2009
    %2011 = vset.pattern.permute.xlu0 0
    %2012 = vperm.xlu0 %2011, %v1689
    %v2013 = vpop.permute.xlu0 %2012
    %2014 = vset.pattern.permute.xlu0 0
    %2015 = vperm.xlu0 %2014, %v1698
    %v2016 = vpop.permute.xlu0 %2015
    %2017 = vset.pattern.permute.xlu0 0
    %2018 = vperm.xlu0 %2017, %v1707
    %v2019 = vpop.permute.xlu0 %2018
    %2020 = vset.pattern.permute.xlu0 0
    %2021 = vperm.xlu0 %2020, %v1716
    %v2022 = vpop.permute.xlu0 %2021
    %2023 = vset.pattern.permute.xlu0 0
    %2024 = vperm.xlu0 %2023, %v1725
    %v2025 = vpop.permute.xlu0 %2024
    %2026 = vset.pattern.permute.xlu0 0
    %2027 = vperm.xlu0 %2026, %v1734
    %v2028 = vpop.permute.xlu0 %2027
    %2029 = vset.pattern.permute.xlu0 0
    %2030 = vperm.xlu0 %2029, %v1743
    %v2031 = vpop.permute.xlu0 %2030
    %2032 = vset.pattern.permute.xlu0 0
    %2033 = vperm.xlu0 %2032, %v1752
    %v2034 = vpop.permute.xlu0 %2033
    %2035 = vset.pattern.permute.xlu0 0
    %2036 = vperm.xlu0 %2035, %v1761
    %v2037 = vpop.permute.xlu0 %2036
    %2038 = vset.pattern.permute.xlu0 0
    %2039 = vperm.xlu0 %2038, %v1770
    %v2040 = vpop.permute.xlu0 %2039
    %2041 = vset.pattern.permute.xlu0 0
    %2042 = vperm.xlu0 %2041, %v1779
    %v2043 = vpop.permute.xlu0 %2042
    %2044 = vset.pattern.permute.xlu0 0
    %2045 = vperm.xlu0 %2044, %v1788
    %v2046 = vpop.permute.xlu0 %2045
    %2047 = vset.pattern.permute.xlu0 0
    %2048 = vperm.xlu0 %2047, %v1797
    %v2049 = vpop.permute.xlu0 %2048
    %2050 = vset.pattern.permute.xlu0 0
    %2051 = vperm.xlu0 %2050, %v1806
    %v2052 = vpop.permute.xlu0 %2051
    %2053 = vset.pattern.permute.xlu0 0
    %2054 = vperm.xlu0 %2053, %v1815
    %v2055 = vpop.permute.xlu0 %2054
    %2056 = vset.pattern.permute.xlu0 0
    %2057 = vperm.xlu0 %2056, %v1824
    %v2058 = vpop.permute.xlu0 %2057
    %2059 = vset.pattern.permute.xlu0 0
    %2060 = vperm.xlu0 %2059, %v1833
    %v2061 = vpop.permute.xlu0 %2060
    %2062 = vset.pattern.permute.xlu0 0
    %2063 = vperm.xlu0 %2062, %v1842
    %v2064 = vpop.permute.xlu0 %2063
    %2065 = vset.pattern.permute.xlu0 0
    %2066 = vperm.xlu0 %2065, %v1851
    %v2067 = vpop.permute.xlu0 %2066
    %2068 = vset.pattern.permute.xlu0 0
    %2069 = vperm.xlu0 %2068, %v1860
    %v2070 = vpop.permute.xlu0 %2069
    %2071 = vset.pattern.permute.xlu0 0
    %2072 = vperm.xlu0 %2071, %v1869
    %v2073 = vpop.permute.xlu0 %2072
    %2074 = vset.pattern.permute.xlu0 0
    %2075 = vperm.xlu0 %2074, %v1878
    %v2076 = vpop.permute.xlu0 %2075
    %2077 = vset.pattern.permute.xlu0 0
    %2078 = vperm.xlu0 %2077, %v1887
    %v2079 = vpop.permute.xlu0 %2078
    %2080 = vset.pattern.permute.xlu0 0
    %2081 = vperm.xlu0 %2080, %v1896
    %v2082 = vpop.permute.xlu0 %2081
    %2083 = vset.pattern.permute.xlu0 0
    %2084 = vperm.xlu0 %2083, %v1905
    %v2085 = vpop.permute.xlu0 %2084
    %2086 = vset.pattern.permute.xlu0 0
    %2087 = vperm.xlu0 %2086, %v1914
    %v2088 = vpop.permute.xlu0 %2087
    %2089 = vset.pattern.permute.xlu0 0
    %2090 = vperm.xlu0 %2089, %v1923
    %v2091 = vpop.permute.xlu0 %2090
    %2092 = vset.pattern.permute.xlu0 0
    %2093 = vperm.xlu0 %2092, %v1932
    %v2094 = vpop.permute.xlu0 %2093
    %2095 = vset.pattern.permute.xlu0 0
    %2096 = vperm.xlu0 %2095, %v1941
    %v2097 = vpop.permute.xlu0 %2096
    %2098 = vset.pattern.permute.xlu0 0
    %2099 = vperm.xlu0 %2098, %v1950
    %v2100 = vpop.permute.xlu0 %2099
    %2101 = vset.pattern.permute.xlu0 0
    %2102 = vperm.xlu0 %2101, %v1959
    %v2103 = vpop.permute.xlu0 %2102
    %v2104 = vlaneseq
    %v2105 = vand.u32 %v2104, 127
    %v2106 = vperm.slane %v1962, %v2105
    %v2107 = vadd.s32 %v2105, 4294967288
    %v2108 = vperm.slane %v1965, %v2107
    %vm2109 = vcmask 130112
    %v2110 = vsel %vm2109, %v2108, %v2106
    %v2111 = vadd.s32 %v2105, 4294967280
    %v2112 = vperm.slane %v1968, %v2111
    %vm2113 = vcmask 195712
    %v2114 = vsel %vm2113, %v2112, %v2110
    %v2115 = vadd.s32 %v2105, 4294967272
    %v2116 = vperm.slane %v1971, %v2115
    %vm2117 = vcmask 261312
    %v2118 = vsel %vm2117, %v2116, %v2114
    %v2119 = vadd.s32 %v2105, 4294967264
    %v2120 = vperm.slane %v1974, %v2119
    %vm2121 = vcmask 326912
    %v2122 = vsel %vm2121, %v2120, %v2118
    %v2123 = vadd.s32 %v2105, 4294967256
    %v2124 = vperm.slane %v1977, %v2123
    %vm2125 = vcmask 392512
    %v2126 = vsel %vm2125, %v2124, %v2122
    %v2127 = vadd.s32 %v2105, 4294967248
    %v2128 = vperm.slane %v1980, %v2127
    %vm2129 = vcmask 458112
    %v2130 = vsel %vm2129, %v2128, %v2126
    %v2131 = vadd.s32 %v2105, 4294967240
    %v2132 = vperm.slane %v1983, %v2131
    %vm2133 = vcmask 523712
    %v2134 = vsel %vm2133, %v2132, %v2130
    %v2135 = vadd.s32 %v2105, 4294967232
    %v2136 = vperm.slane %v1986, %v2135
    %vm2137 = vcmask 589312
    %v2138 = vsel %vm2137, %v2136, %v2134
    %v2139 = vadd.s32 %v2105, 4294967224
    %v2140 = vperm.slane %v1989, %v2139
    %vm2141 = vcmask 654912
    %v2142 = vsel %vm2141, %v2140, %v2138
    %v2143 = vadd.s32 %v2105, 4294967216
    %v2144 = vperm.slane %v1992, %v2143
    %vm2145 = vcmask 720512
    %v2146 = vsel %vm2145, %v2144, %v2142
    %v2147 = vadd.s32 %v2105, 4294967208
    %v2148 = vperm.slane %v1995, %v2147
    %vm2149 = vcmask 786112
    %v2150 = vsel %vm2149, %v2148, %v2146
    %v2151 = vadd.s32 %v2105, 4294967200
    %v2152 = vperm.slane %v1998, %v2151
    %vm2153 = vcmask 851712
    %v2154 = vsel %vm2153, %v2152, %v2150
    %v2155 = vadd.s32 %v2105, 4294967192
    %v2156 = vperm.slane %v2001, %v2155
    %vm2157 = vcmask 917312
    %v2158 = vsel %vm2157, %v2156, %v2154
    %v2159 = vadd.s32 %v2105, 4294967184
    %v2160 = vperm.slane %v2004, %v2159
    %vm2161 = vcmask 982912
    %v2162 = vsel %vm2161, %v2160, %v2158
    %v2163 = vadd.s32 %v2105, 4294967176
    %v2164 = vperm.slane %v2007, %v2163
    %vm2165 = vcmask 1048512
    %v2166 = vsel %vm2165, %v2164, %v2162
    %v2167 = vperm.slane %v2010, %v2105
    %v2168 = vperm.slane %v2013, %v2107
    %v2169 = vsel %vm2109, %v2168, %v2167
    %v2170 = vperm.slane %v2016, %v2111
    %v2171 = vsel %vm2113, %v2170, %v2169
    %v2172 = vperm.slane %v2019, %v2115
    %v2173 = vsel %vm2117, %v2172, %v2171
    %v2174 = vperm.slane %v2022, %v2119
    %v2175 = vsel %vm2121, %v2174, %v2173
    %v2176 = vperm.slane %v2025, %v2123
    %v2177 = vsel %vm2125, %v2176, %v2175
    %v2178 = vperm.slane %v2028, %v2127
    %v2179 = vsel %vm2129, %v2178, %v2177
    %v2180 = vperm.slane %v2031, %v2131
    %v2181 = vsel %vm2133, %v2180, %v2179
    %v2182 = vperm.slane %v2034, %v2135
    %v2183 = vsel %vm2137, %v2182, %v2181
    %v2184 = vperm.slane %v2037, %v2139
    %v2185 = vsel %vm2141, %v2184, %v2183
    %v2186 = vperm.slane %v2040, %v2143
    %v2187 = vsel %vm2145, %v2186, %v2185
    %v2188 = vperm.slane %v2043, %v2147
    %v2189 = vsel %vm2149, %v2188, %v2187
    %v2190 = vperm.slane %v2046, %v2151
    %v2191 = vsel %vm2153, %v2190, %v2189
    %v2192 = vperm.slane %v2049, %v2155
    %v2193 = vsel %vm2157, %v2192, %v2191
    %v2194 = vperm.slane %v2052, %v2159
    %v2195 = vsel %vm2161, %v2194, %v2193
    %v2196 = vperm.slane %v2055, %v2163
    %v2197 = vsel %vm2165, %v2196, %v2195
    %v2198 = vperm.slane %v2058, %v2105
    %v2199 = vperm.slane %v2061, %v2107
    %v2200 = vsel %vm2109, %v2199, %v2198
    %v2201 = vperm.slane %v2064, %v2111
    %v2202 = vsel %vm2113, %v2201, %v2200
    %v2203 = vperm.slane %v2067, %v2115
    %v2204 = vsel %vm2117, %v2203, %v2202
    %v2205 = vperm.slane %v2070, %v2119
    %v2206 = vsel %vm2121, %v2205, %v2204
    %v2207 = vperm.slane %v2073, %v2123
    %v2208 = vsel %vm2125, %v2207, %v2206
    %v2209 = vperm.slane %v2076, %v2127
    %v2210 = vsel %vm2129, %v2209, %v2208
    %v2211 = vperm.slane %v2079, %v2131
    %v2212 = vsel %vm2133, %v2211, %v2210
    %v2213 = vperm.slane %v2082, %v2135
    %v2214 = vsel %vm2137, %v2213, %v2212
    %v2215 = vperm.slane %v2085, %v2139
    %v2216 = vsel %vm2141, %v2215, %v2214
    %v2217 = vperm.slane %v2088, %v2143
    %v2218 = vsel %vm2145, %v2217, %v2216
    %v2219 = vperm.slane %v2091, %v2147
    %v2220 = vsel %vm2149, %v2219, %v2218
    %v2221 = vperm.slane %v2094, %v2151
    %v2222 = vsel %vm2153, %v2221, %v2220
    %v2223 = vperm.slane %v2097, %v2155
    %v2224 = vsel %vm2157, %v2223, %v2222
    %v2225 = vperm.slane %v2100, %v2159
    %v2226 = vsel %vm2161, %v2225, %v2224
    %v2227 = vperm.slane %v2103, %v2163
    %v2228 = vsel %vm2165, %v2227, %v2226
    %v2229 = vrot.slane %v2197, 7
    %v2230 = vrot.slane %v2228, 6
    %vm2231 = vcmask 1040384
    %v2232 = vsel %vm2231, %v2166, %v2229
    %vm2233 = vcmask 1041408
    %v2234 = vsel %vm2233, %v2232, %v2230
    %v2236 = vlaneseq
    %vm2237 = vcmp.ge.s32.totalorder %v2236, 0
    %vm2238 = vcmp.lt.s32.totalorder %v2236, 384
    %vm2239 = vmand %vm2237, %vm2238
    %2240 = vst.msk [vmem:[#allocation3] sm:$0x7] %vm2239, %v2234
    // Predicated region
    $region30: #{tpu_custom_call.1} parent=1 // pred_check
      _
    $region31: #{tpu_custom_call.1} parent=1 // pred_check_branch
      %2242 = sbr.rel (0) target = $region33
    $region32: #{tpu_custom_call.1} parent=1 // pred_region
      %2244 = vsyncadd [#allocation4], 0
      %s2246 = sshll.u32 [#allocation3], 4
      %s2247 = int_to_ptr.vmem [resolvable:$true] %s2246
      %s2248 = sshll.u32 %s7, 4
      %s2249 = int_to_ptr.hbm [resolvable:$true] %s2248
      %2251 = dma.vmem_to_hbm [thread:$0]  %s2247, 48, %s2249, [#allocation4]
    $region33: #{tpu_custom_call.1} parent=1 // pred_fallthru
      _
    // Predicated region
    $region34: #{tpu_custom_call.1} parent=1 // pred_check
      _
    $region35: #{tpu_custom_call.1} parent=1 // pred_check_branch
      %2253 = sbr.rel (0) target = $region37
    $region36: #{tpu_custom_call.1} parent=1 // pred_region
      %2255 = dma.done [#allocation4], 48
    $region37: #{tpu_custom_call.1} parent=1 // pred_fallthru
      _
    %2256 = vsyncpa [#allocation4], 1

</llo_original>
